<compile_context>
chip_gen: v5e
topology: v5e:2x2
jax: 0.10.0
libtpu: 0.0.40
codegen_flags: <defaults>
</compile_context>

<pallas_src>
import functools

import jax
import jax.numpy as jnp
import numpy as np
from jax.experimental import pallas as pl
from jax.experimental.pallas import tpu as pltpu

# Finite stand-in for -inf (plain Python float -> lowers as a literal).
NEG = -1e30


def _ctc_kernel(blk_last_smem, blk_maxil_smem, logp_ref, ext_ref, il_ref,
                tl_ref, out_ref, lp_scr, alpha_scr, *, blank, tm, c_chunk,
                vpu_gather):
    """One (batch-block, time-tile) step of the CTC alpha recursion.

    blk_last_smem  : SMEM int32 (n_blocks,) -- last time tile with real data
    blk_maxil_smem : SMEM int32 (n_blocks,) -- block-local max input length
    logp_ref : VMEM (B, tm, C) f32   -- log-probs, current time tile
    ext_ref  : VMEM (B, Lpad) int32  -- blank-interleaved extended targets
    il_ref   : VMEM (B, 1) int32     -- input lengths
    tl_ref   : VMEM (B, 1) int32     -- target lengths
    out_ref  : VMEM (B, 1) f32       -- per-sample negative log-likelihood
    lp_scr   : VMEM (tm, B, Lpad) f32-- gathered log-probs for this tile
    alpha_scr: VMEM (B, Lpad) f32    -- alpha carried across time tiles
    """
    # program_id / num_programs only at top level (interpret-mode safe).
    b_blk = pl.program_id(0)
    kt = pl.program_id(1)
    n_kt = pl.num_programs(1)

    B, _, C = logp_ref.shape
    Lpad = ext_ref.shape[1]

    max_il = blk_maxil_smem[b_blk]
    t_base = kt * tm
    is_first = kt == 0
    is_last = kt == n_kt - 1
    # kt==0 always runs so alpha is initialized even for degenerate lengths.
    active = jnp.logical_or(is_first, t_base < max_il)

    @pl.when(active)
    def _():
        ext = ext_ref[...]                       # (B, Lpad) int32
        logp_t = logp_ref[...]                   # (B, tm, C) f32

        # ---- gather: g[b, t, s] = logp[b, t, ext[b, s]] -------------------
        if vpu_gather:
            # Small-C fast path: VPU select-accumulate, no MXU at tiny K.
            g = jnp.zeros((B, tm, Lpad), jnp.float32)
            for c in range(C):
                sel = (ext == c)[:, None, :]                    # (B,1,Lpad)
                g = g + jnp.where(sel, logp_t[:, :, c:c + 1], 0.0)
        else:
            # bf16 MXU one-hot gather; exact-f32 via hi/lo split of logp.
            lp_hi = logp_t.astype(jnp.bfloat16)
            lp_lo = (logp_t - lp_hi.astype(jnp.float32)).astype(jnp.bfloat16)
            dn = (((2,), (1,)), ((0,), (0,)))
            g = jnp.zeros((B, tm, Lpad), jnp.float32)
            for c0 in range(0, C, c_chunk):
                c1 = min(c0 + c_chunk, C)
                cls = c0 + jax.lax.broadcasted_iota(
                    jnp.int32, (1, c1 - c0, Lpad), 1)
                oh = (cls == ext[:, None, :]).astype(jnp.bfloat16)  # (B,cc,Lpad)
                g = g + jax.lax.dot_general(
                    lp_hi[:, :, c0:c1], oh, dn,
                    preferred_element_type=jnp.float32)
                g = g + jax.lax.dot_general(
                    lp_lo[:, :, c0:c1], oh, dn,
                    preferred_element_type=jnp.float32)

        # Time-major scratch so each serial step reads one aligned (B, Lpad)
        # tile (one relayout per tile instead of a strided load per step).
        lp_scr[...] = jnp.swapaxes(g, 0, 1)                     # (tm,B,Lpad)

        # ---- recursion constants (hoisted out of the serial loop) ---------
        lane = jax.lax.broadcasted_iota(jnp.int32, (B, Lpad), 1)
        blank_fill = jnp.full((B, 2), blank, jnp.int32)
        prev2_ext = jnp.concatenate([blank_fill, ext[:, :Lpad - 2]], axis=1)
        skip_ok = (ext != blank) & (ext != prev2_ext) & (lane >= 2)
        skip_add = jnp.where(skip_ok, 0.0, NEG)                 # (B, Lpad)
        neg1 = jnp.full((B, 1), NEG, jnp.float32)
        neg2 = jnp.full((B, 2), NEG, jnp.float32)
        il_col = il_ref[...]                                    # (B, 1)

        @pl.when(is_first)
        def _():
            # t = 0: only lattice positions 0 (leading blank) and 1 reachable.
            alpha_scr[...] = jnp.where(lane <= 1, lp_scr[0], NEG)

        t_start = jnp.where(is_first, 1, 0)
        t_end = jnp.clip(max_il - t_base, 0, tm)

        def step(t, alpha):
            lp_t = lp_scr[t]                                    # (B, Lpad)
            # NEG-filled shifts handle the s-1 / s-2 lane boundaries, so no
            # per-step lane masks are needed.
            prev1 = jnp.concatenate([neg1, alpha[:, :Lpad - 1]], axis=1)
            prev2 = jnp.concatenate([neg2, alpha[:, :Lpad - 2]], axis=1) + skip_add
            m = jnp.maximum(jnp.maximum(alpha, prev1), prev2)
            lse = m + jnp.log(jnp.exp(alpha - m) + jnp.exp(prev1 - m)
                              + jnp.exp(prev2 - m))
            new_alpha = lse + lp_t
            # Freeze samples whose sequence already ended (global time).
            return jnp.where((t_base + t) < il_col, new_alpha, alpha)

        alpha_scr[...] = jax.lax.fori_loop(t_start, t_end, step, alpha_scr[...])

    @pl.when(is_last)
    def _():
        # loss = -logsumexp(alpha[L-1], alpha[L-2]),  L = 2*target_len + 1.
        lane = jax.lax.broadcasted_iota(jnp.int32, (B, Lpad), 1)
        alpha = alpha_scr[...]
        end = 2 * tl_ref[...]                                   # (B, 1)
        final_mask = (lane == end) | (lane == end - 1)
        fv = jnp.where(final_mask, alpha, NEG)
        m = jnp.max(fv, axis=1, keepdims=True)
        ll = m + jnp.log(jnp.sum(jnp.exp(fv - m), axis=1, keepdims=True))
        loss = -ll
        # zero_infinity=True: impossible alignments (~1e30) become 0.
        loss = jnp.where(loss > 1e29, 0.0, loss)
        out_ref[...] = loss


def _vmem_capacity_bytes():
    try:
        return int(pltpu.get_tpu_info().vmem_capacity_bytes)
    except Exception:
        return 64 * 1024 * 1024  # conservative default (v7x per-TensorCore)


def _pick_batch_block(n):
    """Widest sublane batching that still leaves >=2 batch blocks (v7x 2 TCs)."""
    for b in (32, 16):
        if n >= 2 * b:
            return b
    return 8


def _build_ext_targets(targets, blank, lpad):
    """int32 extended targets (blank, t0, blank, t1, ..., blank), lane-padded."""
    targets = targets.astype(jnp.int32)
    N, S = targets.shape
    if S == 0:
        return jnp.full((N, lpad), blank, jnp.int32)
    L = 2 * S + 1
    s_idx = jnp.arange(lpad)
    is_blank_pos = (s_idx % 2) == 0
    lab_idx = jnp.clip(jnp.where(is_blank_pos, 0, (s_idx - 1) // 2), 0, S - 1)
    gathered = jnp.take(targets, lab_idx, axis=1)
    ext = jnp.where((is_blank_pos | (s_idx >= L))[None, :], blank, gathered)
    return ext.astype(jnp.int32)


def ctc_loss_pallas(log_probs, targets, input_lens, target_lens,
                    blank=4, reduction='mean'):
    """Mirrors CTCLoss.forward. log_probs: (N, T, C), already log-softmaxed."""
    N, T, C = log_probs.shape
    S = targets.shape[1]
    lpad = max(128, ((2 * S + 1 + 127) // 128) * 128)

    B = _pick_batch_block(N)
    Npad = ((N + B - 1) // B) * B
    n_bb = Npad // B

    # --- time tiling: bytes that scale with tm (double-buffered logp blocks,
    #     gathered scratch + in-flight value, bf16 hi/lo copies) fit in ~1/4
    #     of the device's VMEM (64 MiB v7x -> 16 MiB; 128 MiB v5e/v6e -> 32).
    vmem_cap = _vmem_capacity_bytes()
    per_t = B * (12 * C + 8 * lpad)
    budget = vmem_cap // 4
    tm_cap = max(8, (budget // per_t) // 8 * 8)
    t_pad8 = ((T + 7) // 8) * 8
    tm = min(t_pad8, tm_cap)
    Tpad = ((T + tm - 1) // tm) * tm
    n_kt = Tpad // tm

    vpu_gather = C < 128
    # K-aligned one-hot chunk, sized so the (B, chunk, Lpad) bf16 temp <~2 MiB.
    c_chunk = max(128, ((2 * 1024 * 1024) // (B * lpad * 2)) // 128 * 128)

    lp = jnp.pad(log_probs.astype(jnp.float32),
                 ((0, Npad - N), (0, Tpad - T), (0, 0)))
    ext = _build_ext_targets(targets, blank, lpad)
    ext = jnp.pad(ext, ((0, Npad - N), (0, 0)), constant_values=blank)
    il = jnp.pad(input_lens.astype(jnp.int32), (0, Npad - N), constant_values=1)
    tl = jnp.pad(target_lens.astype(jnp.int32), (0, Npad - N), constant_values=0)
    il_col = il.reshape(Npad, 1)
    tl_col = tl.reshape(Npad, 1)

    # Scalar-prefetch tables (SMEM): per-block max input length and the last
    # time tile that contains real data (clamps the logp index_map so padded
    # time tiles are neither re-fetched from HBM nor computed).
    blk_maxil = jnp.minimum(jnp.max(il.reshape(n_bb, B), axis=1),
                            Tpad).astype(jnp.int32)
    blk_last = jnp.clip((blk_maxil + tm - 1) // tm - 1, 0,
                        n_kt - 1).astype(jnp.int32)

    def logp_index_map(b, kt, last_ref, maxil_ref):
        return (b, jnp.minimum(kt, last_ref[b]), 0)

    grid_spec = pltpu.PrefetchScalarGridSpec(
        num_scalar_prefetch=2,
        grid=(n_bb, n_kt),
        in_specs=[
            pl.BlockSpec((B, tm, C), logp_index_map),
            pl.BlockSpec((B, lpad), lambda b, kt, *_: (b, 0)),
            pl.BlockSpec((B, 1), lambda b, kt, *_: (b, 0)),
            pl.BlockSpec((B, 1), lambda b, kt, *_: (b, 0)),
        ],
        out_specs=pl.BlockSpec((B, 1), lambda b, kt, *_: (b, 0)),
        scratch_shapes=[
            pltpu.VMEM((tm, B, lpad), jnp.float32),   # per-tile gathered logp
            pltpu.VMEM((B, lpad), jnp.float32),       # carried alpha
        ],
    )

    oh_bytes = 0 if vpu_gather else 2 * B * min(C, c_chunk) * lpad * 2
    est = (2 * B * tm * C * 4            # double-buffered logp blocks
           + 2 * B * tm * lpad * 4       # lp_scr scratch + gathered value
           + B * tm * C * 4              # bf16 hi/lo copies (upper bound)
           + oh_bytes                    # per-chunk one-hot temp
           + 8 * B * lpad * 4)           # alpha / ext / masks
    vmem_limit = int(min(vmem_cap * 0.9, max(32 * 1024 * 1024, 2 * est)))

    kernel = functools.partial(_ctc_kernel, blank=blank, tm=tm,
                               c_chunk=c_chunk, vpu_gather=vpu_gather)
    per_sample = pl.pallas_call(
        kernel,
        out_shape=jax.ShapeDtypeStruct((Npad, 1), jnp.float32),
        grid_spec=grid_spec,
        compiler_params=pltpu.CompilerParams(
            dimension_semantics=("parallel", "arbitrary"),
            vmem_limit_bytes=vmem_limit),
    )(blk_last, blk_maxil, lp, ext, il_col, tl_col)
    per_sample = per_sample.reshape(Npad)[:N]

    tlf = target_lens.astype(jnp.float32)
    if reduction == 'batchmean':
        return jnp.sum(per_sample) / N
    elif reduction == 'batch':
        return per_sample / tlf
    elif reduction == 'mean':
        return jnp.mean(per_sample / jnp.maximum(tlf, 1.0))
    elif reduction == 'sum':
        return jnp.sum(per_sample)
    else:  # 'none'
        return per_sample


def _ctc_ref_numpy(log_probs, targets, input_lens, target_lens, blank):
    """Pure numpy reference (per-sample losses, zero_infinity=True)."""
    lp = np.asarray(log_probs, np.float64)
    tg = np.asarray(targets)
    N = lp.shape[0]
    out = np.zeros(N, np.float64)

    def lse(vals):
        vals = np.asarray(vals, np.float64)
        m = vals.max()
        if np.isneginf(m):
            return -np.inf
        return m + np.log(np.exp(vals - m).sum())

    for b in range(N):
        tlen = int(target_lens[b]); ilen = int(input_lens[b])
        ext = np.full(2 * tlen + 1, blank, np.int64)
        ext[1::2] = tg[b, :tlen]
        L = len(ext)
        alpha = np.full(L, -np.inf)
        alpha[0] = lp[b, 0, ext[0]]
        if L > 1:
            alpha[1] = lp[b, 0, ext[1]]
        for t in range(1, ilen):
            new = np.full(L, -np.inf)
            for s in range(L):
                cands = [alpha[s]]
                if s >= 1:
                    cands.append(alpha[s - 1])
                if s >= 2 and ext[s] != blank and ext[s] != ext[s - 2]:
                    cands.append(alpha[s - 2])
                new[s] = lse(cands) + lp[b, t, ext[s]]
            alpha = new
        cands = [alpha[L - 1]]
        if L >= 2:
            cands.append(alpha[L - 2])
        loss = -lse(cands)
        if not np.isfinite(loss):
            loss = 0.0
        out[b] = loss
    return out


if __name__ == "__main__":
    key = jax.random.PRNGKey(0)
    N, T, C, S = 2, 12, 6, 5
    blank = 4  # matches module default

    k1, k2 = jax.random.split(key)
    logits = jax.random.normal(k1, (N, T, C), jnp.float32)
    log_probs = jax.nn.log_softmax(logits, axis=-1)          # (N, T, C)
    targets = jax.random.randint(k2, (N, S), 0, 4)           # labels 0..3
    input_lens = jnp.array([12, 9], jnp.int32)
    target_lens = jnp.array([5, 3], jnp.int32)

    loss_mean = ctc_loss_pallas(log_probs, targets, input_lens, target_lens,
                                blank=blank, reduction='mean')
    loss_none = ctc_loss_pallas(log_probs, targets, input_lens, target_lens,
                                blank=blank, reduction='none')
    jax.block_until_ready((loss_mean, loss_none))

    ref_none = _ctc_ref_numpy(np.asarray(log_probs), np.asarray(targets),
                              np.asarray(input_lens), np.asarray(target_lens),
                              blank)
    ref_mean = float(np.mean(ref_none / np.maximum(np.asarray(target_lens), 1)))

    assert np.allclose(np.asarray(loss_none), ref_none, rtol=1e-3, atol=1e-3), \
        (np.asarray(loss_none), ref_none)
    assert np.allclose(float(loss_mean), ref_mean, rtol=1e-3, atol=1e-3), \
        (float(loss_mean), ref_mean)

    print("KERNEL_OK")
</pallas_src>

<mosaic_0001>
module attributes {stable_mosaic.version = 11 : i64} {
  func.func @_ctc_kernel(%arg0: i32, %arg1: i32, %arg2: memref<1xi32, #tpu.memory_space<smem>>, %arg3: memref<1xi32, #tpu.memory_space<smem>>, %arg4: memref<8x16x6xf32, #tpu.memory_space<vmem>>, %arg5: memref<8x128xi32, #tpu.memory_space<vmem>>, %arg6: memref<8x1xi32, #tpu.memory_space<vmem>>, %arg7: memref<8x1xi32, #tpu.memory_space<vmem>>, %arg8: memref<8x1xf32, #tpu.memory_space<vmem>>, %arg9: memref<16x8x128xf32, #tpu.memory_space<vmem>>, %arg10: memref<8x128xf32, #tpu.memory_space<vmem>>) attributes {dimension_semantics = [#tpu.dimension_semantics<parallel>, #tpu.dimension_semantics<arbitrary>], iteration_bounds = array<i64: 1, 1>, scalar_prefetch = 2 : i64, scratch_operands = 2 : i64, tpu.core_type = #tpu.core_type<tc>, window_params = [{transform_indices = @transform_0, window_bounds = array<i64: 8, 16, 6>}, {transform_indices = @transform_1, window_bounds = array<i64: 8, 128>}, {transform_indices = @transform_2, window_bounds = array<i64: 8, 1>}, {transform_indices = @transform_3, window_bounds = array<i64: 8, 1>}, {transform_indices = @transform_4, window_bounds = array<i64: 8, 1>}]} {
    %0 = arith.index_cast %arg0 : i32 to index
    %1 = memref.load %arg3[%0] : memref<1xi32, #tpu.memory_space<smem>>
    %c16_i32 = arith.constant 16 : i32
    %2 = arith.muli %arg1, %c16_i32 : i32
    %c0_i32 = arith.constant 0 : i32
    %3 = arith.cmpi eq, %arg1, %c0_i32 : i32
    %c0_i32_0 = arith.constant 0 : i32
    %4 = arith.cmpi eq, %arg1, %c0_i32_0 : i32
    %5 = arith.cmpi slt, %2, %1 : i32
    %6 = arith.ori %3, %5 : i1
    %7 = arith.extui %6 : i1 to i32
    %c0_i32_1 = arith.constant 0 : i32
    %8 = arith.cmpi ne, %7, %c0_i32_1 : i32
    scf.if %8 {
      %c0 = arith.constant 0 : index
      %c0_3 = arith.constant 0 : index
      %11 = vector.load %arg5[%c0, %c0_3] : memref<8x128xi32, #tpu.memory_space<vmem>>, vector<8x128xi32>
      %c0_4 = arith.constant 0 : index
      %c0_5 = arith.constant 0 : index
      %c0_6 = arith.constant 0 : index
      %12 = vector.load %arg4[%c0_4, %c0_5, %c0_6] : memref<8x16x6xf32, #tpu.memory_space<vmem>>, vector<8x16x6xf32>
      %cst = arith.constant 0.000000e+00 : f32
      %13 = vector.broadcast %cst : f32 to vector<8x16x128xf32>
      %c0_i32_7 = arith.constant 0 : i32
      %14 = vector.broadcast %c0_i32_7 : i32 to vector<8x128xi32>
      %15 = arith.cmpi eq, %11, %14 : vector<8x128xi32>
      %16 = vector.shape_cast %15 : vector<8x128xi1> to vector<8x1x128xi1>
      %17 = vector.extract_strided_slice %12 {offsets = [0, 0, 0], sizes = [8, 16, 1], strides = [1, 1, 1]} : vector<8x16x6xf32> to vector<8x16x1xf32>
      %cst_8 = arith.constant 0.000000e+00 : f32
      %18 = vector.shape_cast %16 : vector<8x1x128xi1> to vector<8x1x128xi1>
      %19 = vector.broadcast %18 : vector<8x1x128xi1> to vector<8x16x128xi1>
      %20 = vector.shape_cast %17 : vector<8x16x1xf32> to vector<8x16x1xf32>
      %21 = vector.broadcast %20 : vector<8x16x1xf32> to vector<8x16x128xf32>
      %22 = vector.broadcast %cst_8 : f32 to vector<8x16x128xf32>
      %23 = arith.select %19, %21, %22 : vector<8x16x128xi1>, vector<8x16x128xf32>
      %24 = arith.addf %13, %23 : vector<8x16x128xf32>
      %c1_i32 = arith.constant 1 : i32
      %25 = vector.broadcast %c1_i32 : i32 to vector<8x128xi32>
      %26 = arith.cmpi eq, %11, %25 : vector<8x128xi32>
      %27 = vector.shape_cast %26 : vector<8x128xi1> to vector<8x1x128xi1>
      %28 = vector.extract_strided_slice %12 {offsets = [0, 0, 1], sizes = [8, 16, 1], strides = [1, 1, 1]} : vector<8x16x6xf32> to vector<8x16x1xf32>
      %cst_9 = arith.constant 0.000000e+00 : f32
      %29 = vector.shape_cast %27 : vector<8x1x128xi1> to vector<8x1x128xi1>
      %30 = vector.broadcast %29 : vector<8x1x128xi1> to vector<8x16x128xi1>
      %31 = vector.shape_cast %28 : vector<8x16x1xf32> to vector<8x16x1xf32>
      %32 = vector.broadcast %31 : vector<8x16x1xf32> to vector<8x16x128xf32>
      %33 = vector.broadcast %cst_9 : f32 to vector<8x16x128xf32>
      %34 = arith.select %30, %32, %33 : vector<8x16x128xi1>, vector<8x16x128xf32>
      %35 = arith.addf %24, %34 : vector<8x16x128xf32>
      %c2_i32 = arith.constant 2 : i32
      %36 = vector.broadcast %c2_i32 : i32 to vector<8x128xi32>
      %37 = arith.cmpi eq, %11, %36 : vector<8x128xi32>
      %38 = vector.shape_cast %37 : vector<8x128xi1> to vector<8x1x128xi1>
      %39 = vector.extract_strided_slice %12 {offsets = [0, 0, 2], sizes = [8, 16, 1], strides = [1, 1, 1]} : vector<8x16x6xf32> to vector<8x16x1xf32>
      %cst_10 = arith.constant 0.000000e+00 : f32
      %40 = vector.shape_cast %38 : vector<8x1x128xi1> to vector<8x1x128xi1>
      %41 = vector.broadcast %40 : vector<8x1x128xi1> to vector<8x16x128xi1>
      %42 = vector.shape_cast %39 : vector<8x16x1xf32> to vector<8x16x1xf32>
      %43 = vector.broadcast %42 : vector<8x16x1xf32> to vector<8x16x128xf32>
      %44 = vector.broadcast %cst_10 : f32 to vector<8x16x128xf32>
      %45 = arith.select %41, %43, %44 : vector<8x16x128xi1>, vector<8x16x128xf32>
      %46 = arith.addf %35, %45 : vector<8x16x128xf32>
      %c3_i32 = arith.constant 3 : i32
      %47 = vector.broadcast %c3_i32 : i32 to vector<8x128xi32>
      %48 = arith.cmpi eq, %11, %47 : vector<8x128xi32>
      %49 = vector.shape_cast %48 : vector<8x128xi1> to vector<8x1x128xi1>
      %50 = vector.extract_strided_slice %12 {offsets = [0, 0, 3], sizes = [8, 16, 1], strides = [1, 1, 1]} : vector<8x16x6xf32> to vector<8x16x1xf32>
      %cst_11 = arith.constant 0.000000e+00 : f32
      %51 = vector.shape_cast %49 : vector<8x1x128xi1> to vector<8x1x128xi1>
      %52 = vector.broadcast %51 : vector<8x1x128xi1> to vector<8x16x128xi1>
      %53 = vector.shape_cast %50 : vector<8x16x1xf32> to vector<8x16x1xf32>
      %54 = vector.broadcast %53 : vector<8x16x1xf32> to vector<8x16x128xf32>
      %55 = vector.broadcast %cst_11 : f32 to vector<8x16x128xf32>
      %56 = arith.select %52, %54, %55 : vector<8x16x128xi1>, vector<8x16x128xf32>
      %57 = arith.addf %46, %56 : vector<8x16x128xf32>
      %c4_i32 = arith.constant 4 : i32
      %58 = vector.broadcast %c4_i32 : i32 to vector<8x128xi32>
      %59 = arith.cmpi eq, %11, %58 : vector<8x128xi32>
      %60 = vector.shape_cast %59 : vector<8x128xi1> to vector<8x1x128xi1>
      %61 = vector.extract_strided_slice %12 {offsets = [0, 0, 4], sizes = [8, 16, 1], strides = [1, 1, 1]} : vector<8x16x6xf32> to vector<8x16x1xf32>
      %cst_12 = arith.constant 0.000000e+00 : f32
      %62 = vector.shape_cast %60 : vector<8x1x128xi1> to vector<8x1x128xi1>
      %63 = vector.broadcast %62 : vector<8x1x128xi1> to vector<8x16x128xi1>
      %64 = vector.shape_cast %61 : vector<8x16x1xf32> to vector<8x16x1xf32>
      %65 = vector.broadcast %64 : vector<8x16x1xf32> to vector<8x16x128xf32>
      %66 = vector.broadcast %cst_12 : f32 to vector<8x16x128xf32>
      %67 = arith.select %63, %65, %66 : vector<8x16x128xi1>, vector<8x16x128xf32>
      %68 = arith.addf %57, %67 : vector<8x16x128xf32>
      %c5_i32 = arith.constant 5 : i32
      %69 = vector.broadcast %c5_i32 : i32 to vector<8x128xi32>
      %70 = arith.cmpi eq, %11, %69 : vector<8x128xi32>
      %71 = vector.shape_cast %70 : vector<8x128xi1> to vector<8x1x128xi1>
      %72 = vector.extract_strided_slice %12 {offsets = [0, 0, 5], sizes = [8, 16, 1], strides = [1, 1, 1]} : vector<8x16x6xf32> to vector<8x16x1xf32>
      %cst_13 = arith.constant 0.000000e+00 : f32
      %73 = vector.shape_cast %71 : vector<8x1x128xi1> to vector<8x1x128xi1>
      %74 = vector.broadcast %73 : vector<8x1x128xi1> to vector<8x16x128xi1>
      %75 = vector.shape_cast %72 : vector<8x16x1xf32> to vector<8x16x1xf32>
      %76 = vector.broadcast %75 : vector<8x16x1xf32> to vector<8x16x128xf32>
      %77 = vector.broadcast %cst_13 : f32 to vector<8x16x128xf32>
      %78 = arith.select %74, %76, %77 : vector<8x16x128xi1>, vector<8x16x128xf32>
      %79 = arith.addf %68, %78 : vector<8x16x128xf32>
      %80 = tpu.transpose %79, [1, 0, 2] : vector<8x16x128xf32> -> vector<16x8x128xf32>
      %c0_14 = arith.constant 0 : index
      %c0_15 = arith.constant 0 : index
      %c0_16 = arith.constant 0 : index
      %81 = vector.load %arg9[%c0_14, %c0_15, %c0_16] : memref<16x8x128xf32, #tpu.memory_space<vmem>>, vector<16x8x128xf32>
      tpu.vector_store %arg9[%c0_14, %c0_15, %c0_16], %80 {strides = array<i32>} : memref<16x8x128xf32, #tpu.memory_space<vmem>>, vector<16x8x128xf32>,
      %82 = tpu.iota {dimensions = array<i32: 1>} : vector<8x128xi32>
      %c4_i32_17 = arith.constant 4 : i32
      %83 = vector.broadcast %c4_i32_17 : i32 to vector<8x2xi32>
      %84 = vector.extract_strided_slice %11 {offsets = [0, 0], sizes = [8, 126], strides = [1, 1]} : vector<8x128xi32> to vector<8x126xi32>
      %85 = tpu.concatenate %83, %84 in 1 : vector<8x2xi32>, vector<8x126xi32> -> vector<8x128xi32>
      %c4_i32_18 = arith.constant 4 : i32
      %86 = vector.broadcast %c4_i32_18 : i32 to vector<8x128xi32>
      %87 = arith.cmpi ne, %11, %86 : vector<8x128xi32>
      %88 = arith.cmpi ne, %11, %85 : vector<8x128xi32>
      %89 = arith.andi %87, %88 : vector<8x128xi1>
      %c2_i32_19 = arith.constant 2 : i32
      %90 = vector.broadcast %c2_i32_19 : i32 to vector<8x128xi32>
      %91 = arith.cmpi sge, %82, %90 : vector<8x128xi32>
      %92 = arith.andi %89, %91 : vector<8x128xi1>
      %cst_20 = arith.constant 0.000000e+00 : f32
      %cst_21 = arith.constant -1.000000e+30 : f32
      %93 = vector.broadcast %cst_20 : f32 to vector<8x128xf32>
      %94 = vector.broadcast %cst_21 : f32 to vector<8x128xf32>
      %95 = arith.select %92, %93, %94 : vector<8x128xi1>, vector<8x128xf32>
      %cst_22 = arith.constant -1.000000e+30 : f32
      %96 = vector.broadcast %cst_22 : f32 to vector<8x1xf32>
      %cst_23 = arith.constant -1.000000e+30 : f32
      %97 = vector.broadcast %cst_23 : f32 to vector<8x2xf32>
      %c0_24 = arith.constant 0 : index
      %c0_25 = arith.constant 0 : index
      %98 = vector.load %arg6[%c0_24, %c0_25] : memref<8x1xi32, #tpu.memory_space<vmem>>, vector<8x1xi32>
      %99 = arith.extui %3 : i1 to i32
      %c0_i32_26 = arith.constant 0 : i32
      %100 = arith.cmpi ne, %99, %c0_i32_26 : i32
      scf.if %100 {
        %c1_i32_36 = arith.constant 1 : i32
        %110 = vector.broadcast %c1_i32_36 : i32 to vector<8x128xi32>
        %111 = arith.cmpi sle, %82, %110 : vector<8x128xi32>
        %c0_37 = arith.constant 0 : index
        %c0_38 = arith.constant 0 : index
        %c0_39 = arith.constant 0 : index
        %112 = vector.load %arg9[%c0_37, %c0_38, %c0_39] : memref<16x8x128xf32, #tpu.memory_space<vmem>>, vector<1x8x128xf32>
        %113 = vector.shape_cast %112 : vector<1x8x128xf32> to vector<8x128xf32>
        %cst_40 = arith.constant -1.000000e+30 : f32
        %114 = vector.broadcast %cst_40 : f32 to vector<8x128xf32>
        %115 = arith.select %111, %113, %114 : vector<8x128xi1>, vector<8x128xf32>
        %c0_41 = arith.constant 0 : index
        %c0_42 = arith.constant 0 : index
        %116 = vector.load %arg10[%c0_41, %c0_42] : memref<8x128xf32, #tpu.memory_space<vmem>>, vector<8x128xf32>
        tpu.vector_store %arg10[%c0_41, %c0_42], %115 {strides = array<i32>} : memref<8x128xf32, #tpu.memory_space<vmem>>, vector<8x128xf32>,
      } else {
      }
      %c1_i32_27 = arith.constant 1 : i32
      %c0_i32_28 = arith.constant 0 : i32
      %101 = arith.select %3, %c1_i32_27, %c0_i32_28 : i32
      %102 = arith.subi %1, %2 : i32
      %c0_i32_29 = arith.constant 0 : i32
      %c16_i32_30 = arith.constant 16 : i32
      %103 = arith.maxsi %c0_i32_29, %102 : i32
      %104 = arith.minsi %c16_i32_30, %103 : i32
      %c0_31 = arith.constant 0 : index
      %c0_32 = arith.constant 0 : index
      %105 = vector.load %arg10[%c0_31, %c0_32] : memref<8x128xf32, #tpu.memory_space<vmem>>, vector<8x128xf32>
      %106 = arith.subi %104, %101 : i32
      %107 = arith.addi %101, %106 : i32
      %c1_i32_33 = arith.constant 1 : i32
      %108 = scf.for %arg11 = %101 to %107 step %c1_i32_33 iter_args(%arg12 = %105) -> (vector<8x128xf32>)  : i32 {
        %110 = arith.index_cast %arg11 : i32 to index
        %c0_36 = arith.constant 0 : index
        %c0_37 = arith.constant 0 : index
        %111 = vector.load %arg9[%110, %c0_36, %c0_37] : memref<16x8x128xf32, #tpu.memory_space<vmem>>, vector<1x8x128xf32>
        %112 = vector.shape_cast %111 : vector<1x8x128xf32> to vector<8x128xf32>
        %113 = vector.extract_strided_slice %arg12 {offsets = [0, 0], sizes = [8, 127], strides = [1, 1]} : vector<8x128xf32> to vector<8x127xf32>
        %114 = tpu.concatenate %96, %113 in 1 : vector<8x1xf32>, vector<8x127xf32> -> vector<8x128xf32>
        %115 = vector.extract_strided_slice %arg12 {offsets = [0, 0], sizes = [8, 126], strides = [1, 1]} : vector<8x128xf32> to vector<8x126xf32>
        %116 = tpu.concatenate %97, %115 in 1 : vector<8x2xf32>, vector<8x126xf32> -> vector<8x128xf32>
        %117 = arith.addf %116, %95 : vector<8x128xf32>
        %118 = arith.maximumf %arg12, %114 : vector<8x128xf32>
        %119 = arith.maximumf %118, %117 : vector<8x128xf32>
        %120 = arith.subf %arg12, %119 : vector<8x128xf32>
        %121 = math.exp %120 : vector<8x128xf32>
        %122 = arith.subf %114, %119 : vector<8x128xf32>
        %123 = math.exp %122 : vector<8x128xf32>
        %124 = arith.addf %121, %123 : vector<8x128xf32>
        %125 = arith.subf %117, %119 : vector<8x128xf32>
        %126 = math.exp %125 : vector<8x128xf32>
        %127 = arith.addf %124, %126 : vector<8x128xf32>
        %128 = math.log %127 : vector<8x128xf32>
        %129 = arith.addf %119, %128 : vector<8x128xf32>
        %130 = arith.addf %129, %112 : vector<8x128xf32>
        %131 = arith.addi %2, %arg11 : i32
        %132 = vector.broadcast %131 : i32 to vector<8x1xi32>
        %133 = arith.cmpi slt, %132, %98 : vector<8x1xi32>
        %134 = vector.shape_cast %133 : vector<8x1xi1> to vector<8x1xi1>
        %135 = vector.broadcast %134 : vector<8x1xi1> to vector<8x128xi1>
        %136 = arith.select %135, %130, %arg12 : vector<8x128xi1>, vector<8x128xf32>
        scf.yield %136 : vector<8x128xf32>
      }
      %c0_34 = arith.constant 0 : index
      %c0_35 = arith.constant 0 : index
      %109 = vector.load %arg10[%c0_34, %c0_35] : memref<8x128xf32, #tpu.memory_space<vmem>>, vector<8x128xf32>
      tpu.vector_store %arg10[%c0_34, %c0_35], %108 {strides = array<i32>} : memref<8x128xf32, #tpu.memory_space<vmem>>, vector<8x128xf32>,
    } else {
    }
    %9 = arith.extui %4 : i1 to i32
    %c0_i32_2 = arith.constant 0 : i32
    %10 = arith.cmpi ne, %9, %c0_i32_2 : i32
    scf.if %10 {
      %11 = tpu.iota {dimensions = array<i32: 1>} : vector<8x128xi32>
      %c0 = arith.constant 0 : index
      %c0_3 = arith.constant 0 : index
      %12 = vector.load %arg10[%c0, %c0_3] : memref<8x128xf32, #tpu.memory_space<vmem>>, vector<8x128xf32>
      %c0_4 = arith.constant 0 : index
      %c0_5 = arith.constant 0 : index
      %13 = vector.load %arg7[%c0_4, %c0_5] : memref<8x1xi32, #tpu.memory_space<vmem>>, vector<8x1xi32>
      %c2_i32 = arith.constant 2 : i32
      %14 = vector.broadcast %c2_i32 : i32 to vector<8x1xi32>
      %15 = arith.muli %14, %13 : vector<8x1xi32>
      %16 = vector.broadcast %15 : vector<8x1xi32> to vector<8x128xi32>
      %17 = arith.cmpi eq, %11, %16 : vector<8x128xi32>
      %c1_i32 = arith.constant 1 : i32
      %18 = vector.broadcast %c1_i32 : i32 to vector<8x1xi32>
      %19 = arith.subi %15, %18 : vector<8x1xi32>
      %20 = vector.broadcast %19 : vector<8x1xi32> to vector<8x128xi32>
      %21 = arith.cmpi eq, %11, %20 : vector<8x128xi32>
      %22 = arith.ori %17, %21 : vector<8x128xi1>
      %cst = arith.constant -1.000000e+30 : f32
      %23 = vector.broadcast %cst : f32 to vector<8x128xf32>
      %24 = arith.select %22, %12, %23 : vector<8x128xi1>, vector<8x128xf32>
      %cst_6 = arith.constant dense<0xFF800000> : vector<8xf32>
      %25 = vector.multi_reduction <maximumf>, %24, %cst_6 [1] : vector<8x128xf32> to vector<8xf32>
      %26 = vector.shape_cast %25 : vector<8xf32> to vector<8x1xf32>
      %27 = vector.broadcast %26 : vector<8x1xf32> to vector<8x128xf32>
      %28 = arith.subf %24, %27 : vector<8x128xf32>
      %29 = math.exp %28 : vector<8x128xf32>
      %cst_7 = arith.constant dense<0.000000e+00> : vector<8xf32>
      %30 = vector.multi_reduction <add>, %29, %cst_7 [1] : vector<8x128xf32> to vector<8xf32>
      %31 = vector.shape_cast %30 : vector<8xf32> to vector<8x1xf32>
      %32 = math.log %31 : vector<8x1xf32>
      %33 = arith.addf %26, %32 : vector<8x1xf32>
      %cst_8 = arith.constant 0.000000e+00 : f32
      %34 = vector.broadcast %cst_8 : f32 to vector<8x1xf32>
      %35 = arith.subf %34, %33 : vector<8x1xf32>
      %cst_9 = arith.constant 1.000000e+29 : f32
      %36 = vector.broadcast %cst_9 : f32 to vector<8x1xf32>
      %37 = arith.cmpf ogt, %35, %36 : vector<8x1xf32>
      %cst_10 = arith.constant 0.000000e+00 : f32
      %38 = vector.broadcast %cst_10 : f32 to vector<8x1xf32>
      %39 = arith.select %37, %38, %35 : vector<8x1xi1>, vector<8x1xf32>
      %c0_11 = arith.constant 0 : index
      %c0_12 = arith.constant 0 : index
      %40 = vector.load %arg8[%c0_11, %c0_12] : memref<8x1xf32, #tpu.memory_space<vmem>>, vector<8x1xf32>
      tpu.vector_store %arg8[%c0_11, %c0_12], %39 {strides = array<i32>} : memref<8x1xf32, #tpu.memory_space<vmem>>, vector<8x1xf32>,
    } else {
    }
    return
  }
  func.func @transform_0(%arg0: i32, %arg1: i32, %arg2: memref<1xi32, #tpu.memory_space<smem>>, %arg3: memref<1xi32, #tpu.memory_space<smem>>) -> (i32, i32, i32) {
    %0 = arith.index_cast %arg0 : i32 to index
    %1 = memref.load %arg2[%0] : memref<1xi32, #tpu.memory_space<smem>>
    %2 = arith.minsi %arg1, %1 : i32
    %c0_i32 = arith.constant 0 : i32
    %c0_i32_0 = arith.constant 0 : i32
    return %arg0, %2, %c0_i32 : i32, i32, i32
  }
  func.func @transform_1(%arg0: i32, %arg1: i32, %arg2: memref<1xi32, #tpu.memory_space<smem>>, %arg3: memref<1xi32, #tpu.memory_space<smem>>) -> (i32, i32) {
    %c0_i32 = arith.constant 0 : i32
    %c0_i32_0 = arith.constant 0 : i32
    return %arg0, %c0_i32 : i32, i32
  }
  func.func @transform_2(%arg0: i32, %arg1: i32, %arg2: memref<1xi32, #tpu.memory_space<smem>>, %arg3: memref<1xi32, #tpu.memory_space<smem>>) -> (i32, i32) {
    %c0_i32 = arith.constant 0 : i32
    %c0_i32_0 = arith.constant 0 : i32
    return %arg0, %c0_i32 : i32, i32
  }
  func.func @transform_3(%arg0: i32, %arg1: i32, %arg2: memref<1xi32, #tpu.memory_space<smem>>, %arg3: memref<1xi32, #tpu.memory_space<smem>>) -> (i32, i32) {
    %c0_i32 = arith.constant 0 : i32
    %c0_i32_0 = arith.constant 0 : i32
    return %arg0, %c0_i32 : i32, i32
  }
  func.func @transform_4(%arg0: i32, %arg1: i32, %arg2: memref<1xi32, #tpu.memory_space<smem>>, %arg3: memref<1xi32, #tpu.memory_space<smem>>) -> (i32, i32) {
    %c0_i32 = arith.constant 0 : i32
    %c0_i32_0 = arith.constant 0 : i32
    return %arg0, %c0_i32 : i32, i32
  }
}

</mosaic_0001>

<llo_original>
// kernel: tpu_custom_call.1
$region0: #{tpu_custom_call.1}
  #allocation0 [shape = 'u32[]', space=smem, size = 0x4, offset = 0x4, fixed_abs, tag = 'smem constant byte address 0x4 - core index']
  #allocation1 [shape = 'u32[72,128]{1,0:T(1,128)}', space=vmem, size = 0x9000, scoped, tag = 'internal scratch']
  #allocation2 [shape = 'f32[16,8,128]{2,1,0:T(8,128)}', space=vmem, size = 0x10000, scoped, tag = 'scratch operand']
  #allocation3 [shape = 'f32[8,128]{1,0:T(8,128)}', space=vmem, size = 0x1000, scoped, tag = 'scratch operand']
  #allocation4 [shape = 's32[1]{0}', space=sflag, size = 0x4, scoped, tag = 'scoped memory for tpu_custom_call.1']
  #allocation5 [shape = 's32[1]{0:T(128)S(6)}', space=smem, size = 0x200, scoped, tag = 'prefetched SMEM operand 0']
  #allocation6 [shape = 's32[1]{0:T(128)S(6)}', space=smem, size = 0x200, scoped, tag = 'prefetched SMEM operand 1']
  %s0 = inlined_call_operand.<no memory space> [shape: s32[1], index: 0, kind: input, shape index: {}]
  %s1 = inlined_call_operand.<no memory space> [shape: s32[1], index: 1, kind: input, shape index: {}]
  %s2 = inlined_call_operand.vmem [shape: f32[8,16,6], index: 2, kind: input, shape index: {}]
  %s3 = inlined_call_operand.vmem [shape: s32[8,128], index: 3, kind: input, shape index: {}]
  %s4 = inlined_call_operand.vmem [shape: s32[8,1], index: 4, kind: input, shape index: {}]
  %s5 = inlined_call_operand.vmem [shape: s32[8,1], index: 5, kind: input, shape index: {}]
  %s6 = inlined_call_operand.vmem [shape: f32[8,1], index: 6, kind: output, shape index: {}]
  %s7 = sld [smem:[#allocation0]]
  $region45: #{tpu_custom_call.1} parent=0
    _
  %s9 = ssub.s32 1, %s7
  %s10 = scalar_select 0, %s9, %s7
  %11 = sst [smem:[#allocation5]] %s0
  %12 = sst [smem:[#allocation6]] %s1
  // Predicated region
  $region2: #{tpu_custom_call.1} parent=0 // pred_check
    _
  $region3: #{tpu_custom_call.1} parent=0 // pred_check_branch
    %14 = sbr.rel (0) target = $region5
  $region4: #{tpu_custom_call.1} parent=0 // pred_region
    %s15 = sld [smem:[#allocation5]]
    %p16 = scmp.lt.s32.totalorder 0, %s15
    %s17 = scalar_select %p16, 0, %s15
    %s18 = smul.u32 2, %s17
    %p19 = scmp.lt.s32.totalorder %s18, 1
    %s20 = scalar_select %p19, %s18, 1
    %s21 = smul.addr %s20, 8
    %s22 = scalar_lea.vmem %s2, %s21
    %s23 = sld [smem:[#allocation5]]
    %p24 = scmp.lt.s32.totalorder 0, %s23
    %s25 = scalar_select %p24, 0, %s23
    %s26 = smul.u32 2, %s25
  $region5: #{tpu_custom_call.1} parent=0 // pred_fallthru
    _
  // Predicated region
  $region6: #{tpu_custom_call.1} parent=0 // pred_check
    _
  $region7: #{tpu_custom_call.1} parent=0 // pred_check_branch
    %28 = sbr.rel (0) target = $region9
  $region8: #{tpu_custom_call.1} parent=0 // pred_region
    _
  $region9: #{tpu_custom_call.1} parent=0 // pred_fallthru
    _
  // Predicated region
  $region10: #{tpu_custom_call.1} parent=0 // pred_check
    _
  $region11: #{tpu_custom_call.1} parent=0 // pred_check_branch
    %30 = sbr.rel (0) target = $region13
  $region12: #{tpu_custom_call.1} parent=0 // pred_region
    _
  $region13: #{tpu_custom_call.1} parent=0 // pred_fallthru
    _
  // Predicated region
  $region14: #{tpu_custom_call.1} parent=0 // pred_check
    _
  $region15: #{tpu_custom_call.1} parent=0 // pred_check_branch
    %32 = sbr.rel (0) target = $region17
  $region16: #{tpu_custom_call.1} parent=0 // pred_region
    _
  $region17: #{tpu_custom_call.1} parent=0 // pred_fallthru
    _
  %s33 = sld [smem:[#allocation5]]
  %p34 = scmp.lt.s32.totalorder 0, %s33
  %s35 = scalar_select %p34, 0, %s33
  %s36 = smul.u32 2, %s35
  %p37 = scmp.lt.s32.totalorder %s36, 1
  %s38 = scalar_select %p37, %s36, 1
  %s39 = smul.addr %s38, 8
  %s40 = scalar_lea.vmem %s2, %s39
  %s41 = sld [smem:[#allocation5]]
  %p42 = scmp.lt.s32.totalorder 0, %s41
  %s43 = scalar_select %p42, 0, %s41
  %s44 = smul.u32 2, %s43
  %p45 = scmp.lt.s32.totalorder %s44, 1
  %s46 = scalar_select %p45, %s44, 1
  %s47 = smul.addr %s46, 8
  %s48 = scalar_lea.vmem %s2, %s47
  %s49 = sld [smem:[#allocation5]]
  %p50 = scmp.lt.s32.totalorder 0, %s49
  %s51 = scalar_select %p50, 0, %s49
  %s52 = smul.u32 2, %s51
  %s53 = sld [smem:[#allocation6]]
  %s54 = smul.u32 0, 16
  %p55 = scmp.eq.s32.totalorder 0, 0
  %p56 = scmp.lt.s32.totalorder %s54, %s53
  %p57 = por %p55, %p56
  // Predicated region
  $region18: #{tpu_custom_call.1} parent=0 // pred_check
    %p58 = pneg %p57
  $region19: #{tpu_custom_call.1} parent=0 // pred_check_branch
    %60 = sbr.rel (%p58) target = $region21
  $region20: #{tpu_custom_call.1} parent=0 // pred_region
    %v61 = vld [vmem:[%s3] sm:$0xff]
    %v62 = vld [vmem:[%s48] sm:$0xff]
    %v63 = vld [vmem:[%s48 + $0x8] sm:$0xff]
    %v64 = vld [vmem:[%s48 + $0x10] sm:$0xff]
    %v65 = vld [vmem:[%s48 + $0x18] sm:$0xff]
    %v66 = vld [vmem:[%s48 + $0x20] sm:$0xff]
    %v67 = vld [vmem:[%s48 + $0x28] sm:$0xff]
    %v68 = vld [vmem:[%s48 + $0x30] sm:$0xff]
    %v69 = vld [vmem:[%s48 + $0x38] sm:$0xff]
    %v70 = vld [vmem:[%s48 + $0x40] sm:$0xff]
    %v71 = vld [vmem:[%s48 + $0x48] sm:$0xff]
    %v72 = vld [vmem:[%s48 + $0x50] sm:$0xff]
    %v73 = vld [vmem:[%s48 + $0x58] sm:$0xff]
    %v74 = vld [vmem:[%s48 + $0x60] sm:$0xff]
    %v75 = vld [vmem:[%s48 + $0x68] sm:$0xff]
    %v76 = vld [vmem:[%s48 + $0x70] sm:$0xff]
    %v77 = vld [vmem:[%s48 + $0x78] sm:$0xff]
    %vm78 = vcmp.eq.s32.totalorder %v61, 0
    %v79 = vsel %vm78, 1, 0
    %v80 = vrot.slane %v79, 1
    %v81 = vrot.slane %v79, 2
    %v82 = vrot.slane %v79, 3
    %v83 = vrot.slane %v79, 4
    %v84 = vrot.slane %v79, 5
    %v85 = vrot.slane %v79, 6
    %v86 = vrot.slane %v79, 7
    %vm87 = vcmp.ne.s32.totalorder %v80, 0
    %vm88 = vcmp.ne.s32.totalorder %v81, 0
    %vm89 = vcmp.ne.s32.totalorder %v82, 0
    %vm90 = vcmp.ne.s32.totalorder %v83, 0
    %vm91 = vcmp.ne.s32.totalorder %v84, 0
    %vm92 = vcmp.ne.s32.totalorder %v85, 0
    %vm93 = vcmp.ne.s32.totalorder %v86, 0
    %v94 = vsel %vm87, 1, 0
    %v95 = vsel %vm88, 1, 0
    %v96 = vsel %vm89, 1, 0
    %v97 = vsel %vm90, 1, 0
    %v98 = vsel %vm91, 1, 0
    %v99 = vsel %vm92, 1, 0
    %v100 = vsel %vm93, 1, 0
    %v101 = vperm.slane %v79, 0
    %v102 = vperm.slane %v94, 0
    %v103 = vperm.slane %v95, 0
    %v104 = vperm.slane %v96, 0
    %v105 = vperm.slane %v97, 0
    %v106 = vperm.slane %v98, 0
    %v107 = vperm.slane %v99, 0
    %v108 = vperm.slane %v100, 0
    %vm109 = vcmp.eq.s32.totalorder %v101, 1
    %vm110 = vcmp.eq.s32.totalorder %v102, 1
    %vm111 = vcmp.eq.s32.totalorder %v103, 1
    %vm112 = vcmp.eq.s32.totalorder %v104, 1
    %vm113 = vcmp.eq.s32.totalorder %v105, 1
    %vm114 = vcmp.eq.s32.totalorder %v106, 1
    %vm115 = vcmp.eq.s32.totalorder %v107, 1
    %vm116 = vcmp.eq.s32.totalorder %v108, 1
    %118 = vset.pattern.permute.xlu0 0
    %119 = vperm.xlu0 %118, %v62
    %v120 = vpop.permute.xlu0 %119
    %123 = vset.pattern.permute.xlu0 0
    %124 = vperm.xlu0 %123, %v63
    %v125 = vpop.permute.xlu0 %124
    %128 = vset.pattern.permute.xlu0 0
    %129 = vperm.xlu0 %128, %v64
    %v130 = vpop.permute.xlu0 %129
    %133 = vset.pattern.permute.xlu0 0
    %134 = vperm.xlu0 %133, %v65
    %v135 = vpop.permute.xlu0 %134
    %138 = vset.pattern.permute.xlu0 0
    %139 = vperm.xlu0 %138, %v66
    %v140 = vpop.permute.xlu0 %139
    %143 = vset.pattern.permute.xlu0 0
    %144 = vperm.xlu0 %143, %v67
    %v145 = vpop.permute.xlu0 %144
    %148 = vset.pattern.permute.xlu0 0
    %149 = vperm.xlu0 %148, %v68
    %v150 = vpop.permute.xlu0 %149
    %153 = vset.pattern.permute.xlu0 0
    %154 = vperm.xlu0 %153, %v69
    %v155 = vpop.permute.xlu0 %154
    %158 = vset.pattern.permute.xlu0 0
    %159 = vperm.xlu0 %158, %v70
    %v160 = vpop.permute.xlu0 %159
    %163 = vset.pattern.permute.xlu0 0
    %164 = vperm.xlu0 %163, %v71
    %v165 = vpop.permute.xlu0 %164
    %168 = vset.pattern.permute.xlu0 0
    %169 = vperm.xlu0 %168, %v72
    %v170 = vpop.permute.xlu0 %169
    %173 = vset.pattern.permute.xlu0 0
    %174 = vperm.xlu0 %173, %v73
    %v175 = vpop.permute.xlu0 %174
    %178 = vset.pattern.permute.xlu0 0
    %179 = vperm.xlu0 %178, %v74
    %v180 = vpop.permute.xlu0 %179
    %183 = vset.pattern.permute.xlu0 0
    %184 = vperm.xlu0 %183, %v75
    %v185 = vpop.permute.xlu0 %184
    %188 = vset.pattern.permute.xlu0 0
    %189 = vperm.xlu0 %188, %v76
    %v190 = vpop.permute.xlu0 %189
    %193 = vset.pattern.permute.xlu0 0
    %194 = vperm.xlu0 %193, %v77
    %v195 = vpop.permute.xlu0 %194
    %v197 = vsel %vm109, %v120, 0.0
    %v198 = vsel %vm109, %v125, 0.0
    %v199 = vsel %vm110, %v130, 0.0
    %v200 = vsel %vm110, %v135, 0.0
    %v201 = vsel %vm111, %v140, 0.0
    %v202 = vsel %vm111, %v145, 0.0
    %v203 = vsel %vm112, %v150, 0.0
    %v204 = vsel %vm112, %v155, 0.0
    %v205 = vsel %vm113, %v160, 0.0
    %v206 = vsel %vm113, %v165, 0.0
    %v207 = vsel %vm114, %v170, 0.0
    %v208 = vsel %vm114, %v175, 0.0
    %v209 = vsel %vm115, %v180, 0.0
    %v210 = vsel %vm115, %v185, 0.0
    %v211 = vsel %vm116, %v190, 0.0
    %v212 = vsel %vm116, %v195, 0.0
    %v213 = vadd.f32 %v197, 0.0
    %v214 = vadd.f32 %v198, 0.0
    %v215 = vadd.f32 %v199, 0.0
    %v216 = vadd.f32 %v200, 0.0
    %v217 = vadd.f32 %v201, 0.0
    %v218 = vadd.f32 %v202, 0.0
    %v219 = vadd.f32 %v203, 0.0
    %v220 = vadd.f32 %v204, 0.0
    %v221 = vadd.f32 %v205, 0.0
    %v222 = vadd.f32 %v206, 0.0
    %v223 = vadd.f32 %v207, 0.0
    %v224 = vadd.f32 %v208, 0.0
    %v225 = vadd.f32 %v209, 0.0
    %v226 = vadd.f32 %v210, 0.0
    %v227 = vadd.f32 %v211, 0.0
    %v228 = vadd.f32 %v212, 0.0
    %vm229 = vcmp.eq.s32.totalorder %v61, 1
    %v230 = vsel %vm229, 1, 0
    %v231 = vrot.slane %v230, 1
    %v232 = vrot.slane %v230, 2
    %v233 = vrot.slane %v230, 3
    %v234 = vrot.slane %v230, 4
    %v235 = vrot.slane %v230, 5
    %v236 = vrot.slane %v230, 6
    %v237 = vrot.slane %v230, 7
    %vm238 = vcmp.ne.s32.totalorder %v231, 0
    %vm239 = vcmp.ne.s32.totalorder %v232, 0
    %vm240 = vcmp.ne.s32.totalorder %v233, 0
    %vm241 = vcmp.ne.s32.totalorder %v234, 0
    %vm242 = vcmp.ne.s32.totalorder %v235, 0
    %vm243 = vcmp.ne.s32.totalorder %v236, 0
    %vm244 = vcmp.ne.s32.totalorder %v237, 0
    %v245 = vsel %vm238, 1, 0
    %v246 = vsel %vm239, 1, 0
    %v247 = vsel %vm240, 1, 0
    %v248 = vsel %vm241, 1, 0
    %v249 = vsel %vm242, 1, 0
    %v250 = vsel %vm243, 1, 0
    %v251 = vsel %vm244, 1, 0
    %v252 = vperm.slane %v230, 0
    %v253 = vperm.slane %v245, 0
    %v254 = vperm.slane %v246, 0
    %v255 = vperm.slane %v247, 0
    %v256 = vperm.slane %v248, 0
    %v257 = vperm.slane %v249, 0
    %v258 = vperm.slane %v250, 0
    %v259 = vperm.slane %v251, 0
    %vm260 = vcmp.eq.s32.totalorder %v252, 1
    %vm261 = vcmp.eq.s32.totalorder %v253, 1
    %vm262 = vcmp.eq.s32.totalorder %v254, 1
    %vm263 = vcmp.eq.s32.totalorder %v255, 1
    %vm264 = vcmp.eq.s32.totalorder %v256, 1
    %vm265 = vcmp.eq.s32.totalorder %v257, 1
    %vm266 = vcmp.eq.s32.totalorder %v258, 1
    %vm267 = vcmp.eq.s32.totalorder %v259, 1
    %268 = vset.pattern.permute.xlu0 1
    %269 = vperm.xlu0 %268, %v62
    %v270 = vpop.permute.xlu0 %269
    %272 = vset.pattern.permute.xlu0 1
    %273 = vperm.xlu0 %272, %v63
    %v274 = vpop.permute.xlu0 %273
    %276 = vset.pattern.permute.xlu0 1
    %277 = vperm.xlu0 %276, %v64
    %v278 = vpop.permute.xlu0 %277
    %280 = vset.pattern.permute.xlu0 1
    %281 = vperm.xlu0 %280, %v65
    %v282 = vpop.permute.xlu0 %281
    %284 = vset.pattern.permute.xlu0 1
    %285 = vperm.xlu0 %284, %v66
    %v286 = vpop.permute.xlu0 %285
    %288 = vset.pattern.permute.xlu0 1
    %289 = vperm.xlu0 %288, %v67
    %v290 = vpop.permute.xlu0 %289
    %292 = vset.pattern.permute.xlu0 1
    %293 = vperm.xlu0 %292, %v68
    %v294 = vpop.permute.xlu0 %293
    %296 = vset.pattern.permute.xlu0 1
    %297 = vperm.xlu0 %296, %v69
    %v298 = vpop.permute.xlu0 %297
    %300 = vset.pattern.permute.xlu0 1
    %301 = vperm.xlu0 %300, %v70
    %v302 = vpop.permute.xlu0 %301
    %304 = vset.pattern.permute.xlu0 1
    %305 = vperm.xlu0 %304, %v71
    %v306 = vpop.permute.xlu0 %305
    %308 = vset.pattern.permute.xlu0 1
    %309 = vperm.xlu0 %308, %v72
    %v310 = vpop.permute.xlu0 %309
    %312 = vset.pattern.permute.xlu0 1
    %313 = vperm.xlu0 %312, %v73
    %v314 = vpop.permute.xlu0 %313
    %316 = vset.pattern.permute.xlu0 1
    %317 = vperm.xlu0 %316, %v74
    %v318 = vpop.permute.xlu0 %317
    %320 = vset.pattern.permute.xlu0 1
    %321 = vperm.xlu0 %320, %v75
    %v322 = vpop.permute.xlu0 %321
    %324 = vset.pattern.permute.xlu0 1
    %325 = vperm.xlu0 %324, %v76
    %v326 = vpop.permute.xlu0 %325
    %328 = vset.pattern.permute.xlu0 1
    %329 = vperm.xlu0 %328, %v77
    %v330 = vpop.permute.xlu0 %329
    %v332 = vsel %vm260, %v270, 0.0
    %v333 = vsel %vm260, %v274, 0.0
    %v334 = vsel %vm261, %v278, 0.0
    %v335 = vsel %vm261, %v282, 0.0
    %v336 = vsel %vm262, %v286, 0.0
    %v337 = vsel %vm262, %v290, 0.0
    %v338 = vsel %vm263, %v294, 0.0
    %v339 = vsel %vm263, %v298, 0.0
    %v340 = vsel %vm264, %v302, 0.0
    %v341 = vsel %vm264, %v306, 0.0
    %v342 = vsel %vm265, %v310, 0.0
    %v343 = vsel %vm265, %v314, 0.0
    %v344 = vsel %vm266, %v318, 0.0
    %v345 = vsel %vm266, %v322, 0.0
    %v346 = vsel %vm267, %v326, 0.0
    %v347 = vsel %vm267, %v330, 0.0
    %v348 = vadd.f32 %v213, %v332
    %v349 = vadd.f32 %v214, %v333
    %v350 = vadd.f32 %v215, %v334
    %v351 = vadd.f32 %v216, %v335
    %v352 = vadd.f32 %v217, %v336
    %v353 = vadd.f32 %v218, %v337
    %v354 = vadd.f32 %v219, %v338
    %v355 = vadd.f32 %v220, %v339
    %v356 = vadd.f32 %v221, %v340
    %v357 = vadd.f32 %v222, %v341
    %v358 = vadd.f32 %v223, %v342
    %v359 = vadd.f32 %v224, %v343
    %v360 = vadd.f32 %v225, %v344
    %v361 = vadd.f32 %v226, %v345
    %v362 = vadd.f32 %v227, %v346
    %v363 = vadd.f32 %v228, %v347
    %vm364 = vcmp.eq.s32.totalorder %v61, 2
    %v365 = vsel %vm364, 1, 0
    %v366 = vrot.slane %v365, 1
    %v367 = vrot.slane %v365, 2
    %v368 = vrot.slane %v365, 3
    %v369 = vrot.slane %v365, 4
    %v370 = vrot.slane %v365, 5
    %v371 = vrot.slane %v365, 6
    %v372 = vrot.slane %v365, 7
    %vm373 = vcmp.ne.s32.totalorder %v366, 0
    %vm374 = vcmp.ne.s32.totalorder %v367, 0
    %vm375 = vcmp.ne.s32.totalorder %v368, 0
    %vm376 = vcmp.ne.s32.totalorder %v369, 0
    %vm377 = vcmp.ne.s32.totalorder %v370, 0
    %vm378 = vcmp.ne.s32.totalorder %v371, 0
    %vm379 = vcmp.ne.s32.totalorder %v372, 0
    %v380 = vsel %vm373, 1, 0
    %v381 = vsel %vm374, 1, 0
    %v382 = vsel %vm375, 1, 0
    %v383 = vsel %vm376, 1, 0
    %v384 = vsel %vm377, 1, 0
    %v385 = vsel %vm378, 1, 0
    %v386 = vsel %vm379, 1, 0
    %v387 = vperm.slane %v365, 0
    %v388 = vperm.slane %v380, 0
    %v389 = vperm.slane %v381, 0
    %v390 = vperm.slane %v382, 0
    %v391 = vperm.slane %v383, 0
    %v392 = vperm.slane %v384, 0
    %v393 = vperm.slane %v385, 0
    %v394 = vperm.slane %v386, 0
    %vm395 = vcmp.eq.s32.totalorder %v387, 1
    %vm396 = vcmp.eq.s32.totalorder %v388, 1
    %vm397 = vcmp.eq.s32.totalorder %v389, 1
    %vm398 = vcmp.eq.s32.totalorder %v390, 1
    %vm399 = vcmp.eq.s32.totalorder %v391, 1
    %vm400 = vcmp.eq.s32.totalorder %v392, 1
    %vm401 = vcmp.eq.s32.totalorder %v393, 1
    %vm402 = vcmp.eq.s32.totalorder %v394, 1
    %403 = vset.pattern.permute.xlu0 2
    %404 = vperm.xlu0 %403, %v62
    %v405 = vpop.permute.xlu0 %404
    %407 = vset.pattern.permute.xlu0 2
    %408 = vperm.xlu0 %407, %v63
    %v409 = vpop.permute.xlu0 %408
    %411 = vset.pattern.permute.xlu0 2
    %412 = vperm.xlu0 %411, %v64
    %v413 = vpop.permute.xlu0 %412
    %415 = vset.pattern.permute.xlu0 2
    %416 = vperm.xlu0 %415, %v65
    %v417 = vpop.permute.xlu0 %416
    %419 = vset.pattern.permute.xlu0 2
    %420 = vperm.xlu0 %419, %v66
    %v421 = vpop.permute.xlu0 %420
    %423 = vset.pattern.permute.xlu0 2
    %424 = vperm.xlu0 %423, %v67
    %v425 = vpop.permute.xlu0 %424
    %427 = vset.pattern.permute.xlu0 2
    %428 = vperm.xlu0 %427, %v68
    %v429 = vpop.permute.xlu0 %428
    %431 = vset.pattern.permute.xlu0 2
    %432 = vperm.xlu0 %431, %v69
    %v433 = vpop.permute.xlu0 %432
    %435 = vset.pattern.permute.xlu0 2
    %436 = vperm.xlu0 %435, %v70
    %v437 = vpop.permute.xlu0 %436
    %439 = vset.pattern.permute.xlu0 2
    %440 = vperm.xlu0 %439, %v71
    %v441 = vpop.permute.xlu0 %440
    %443 = vset.pattern.permute.xlu0 2
    %444 = vperm.xlu0 %443, %v72
    %v445 = vpop.permute.xlu0 %444
    %447 = vset.pattern.permute.xlu0 2
    %448 = vperm.xlu0 %447, %v73
    %v449 = vpop.permute.xlu0 %448
    %451 = vset.pattern.permute.xlu0 2
    %452 = vperm.xlu0 %451, %v74
    %v453 = vpop.permute.xlu0 %452
    %455 = vset.pattern.permute.xlu0 2
    %456 = vperm.xlu0 %455, %v75
    %v457 = vpop.permute.xlu0 %456
    %459 = vset.pattern.permute.xlu0 2
    %460 = vperm.xlu0 %459, %v76
    %v461 = vpop.permute.xlu0 %460
    %463 = vset.pattern.permute.xlu0 2
    %464 = vperm.xlu0 %463, %v77
    %v465 = vpop.permute.xlu0 %464
    %v467 = vsel %vm395, %v405, 0.0
    %v468 = vsel %vm395, %v409, 0.0
    %v469 = vsel %vm396, %v413, 0.0
    %v470 = vsel %vm396, %v417, 0.0
    %v471 = vsel %vm397, %v421, 0.0
    %v472 = vsel %vm397, %v425, 0.0
    %v473 = vsel %vm398, %v429, 0.0
    %v474 = vsel %vm398, %v433, 0.0
    %v475 = vsel %vm399, %v437, 0.0
    %v476 = vsel %vm399, %v441, 0.0
    %v477 = vsel %vm400, %v445, 0.0
    %v478 = vsel %vm400, %v449, 0.0
    %v479 = vsel %vm401, %v453, 0.0
    %v480 = vsel %vm401, %v457, 0.0
    %v481 = vsel %vm402, %v461, 0.0
    %v482 = vsel %vm402, %v465, 0.0
    %v483 = vadd.f32 %v348, %v467
    %v484 = vadd.f32 %v349, %v468
    %v485 = vadd.f32 %v350, %v469
    %v486 = vadd.f32 %v351, %v470
    %v487 = vadd.f32 %v352, %v471
    %v488 = vadd.f32 %v353, %v472
    %v489 = vadd.f32 %v354, %v473
    %v490 = vadd.f32 %v355, %v474
    %v491 = vadd.f32 %v356, %v475
    %v492 = vadd.f32 %v357, %v476
    %v493 = vadd.f32 %v358, %v477
    %v494 = vadd.f32 %v359, %v478
    %v495 = vadd.f32 %v360, %v479
    %v496 = vadd.f32 %v361, %v480
    %v497 = vadd.f32 %v362, %v481
    %v498 = vadd.f32 %v363, %v482
    %vm499 = vcmp.eq.s32.totalorder %v61, 3
    %v500 = vsel %vm499, 1, 0
    %v501 = vrot.slane %v500, 1
    %v502 = vrot.slane %v500, 2
    %v503 = vrot.slane %v500, 3
    %v504 = vrot.slane %v500, 4
    %v505 = vrot.slane %v500, 5
    %v506 = vrot.slane %v500, 6
    %v507 = vrot.slane %v500, 7
    %vm508 = vcmp.ne.s32.totalorder %v501, 0
    %vm509 = vcmp.ne.s32.totalorder %v502, 0
    %vm510 = vcmp.ne.s32.totalorder %v503, 0
    %vm511 = vcmp.ne.s32.totalorder %v504, 0
    %vm512 = vcmp.ne.s32.totalorder %v505, 0
    %vm513 = vcmp.ne.s32.totalorder %v506, 0
    %vm514 = vcmp.ne.s32.totalorder %v507, 0
    %v515 = vsel %vm508, 1, 0
    %v516 = vsel %vm509, 1, 0
    %v517 = vsel %vm510, 1, 0
    %v518 = vsel %vm511, 1, 0
    %v519 = vsel %vm512, 1, 0
    %v520 = vsel %vm513, 1, 0
    %v521 = vsel %vm514, 1, 0
    %v522 = vperm.slane %v500, 0
    %v523 = vperm.slane %v515, 0
    %v524 = vperm.slane %v516, 0
    %v525 = vperm.slane %v517, 0
    %v526 = vperm.slane %v518, 0
    %v527 = vperm.slane %v519, 0
    %v528 = vperm.slane %v520, 0
    %v529 = vperm.slane %v521, 0
    %vm530 = vcmp.eq.s32.totalorder %v522, 1
    %vm531 = vcmp.eq.s32.totalorder %v523, 1
    %vm532 = vcmp.eq.s32.totalorder %v524, 1
    %vm533 = vcmp.eq.s32.totalorder %v525, 1
    %vm534 = vcmp.eq.s32.totalorder %v526, 1
    %vm535 = vcmp.eq.s32.totalorder %v527, 1
    %vm536 = vcmp.eq.s32.totalorder %v528, 1
    %vm537 = vcmp.eq.s32.totalorder %v529, 1
    %538 = vset.pattern.permute.xlu0 3
    %539 = vperm.xlu0 %538, %v62
    %v540 = vpop.permute.xlu0 %539
    %542 = vset.pattern.permute.xlu0 3
    %543 = vperm.xlu0 %542, %v63
    %v544 = vpop.permute.xlu0 %543
    %546 = vset.pattern.permute.xlu0 3
    %547 = vperm.xlu0 %546, %v64
    %v548 = vpop.permute.xlu0 %547
    %550 = vset.pattern.permute.xlu0 3
    %551 = vperm.xlu0 %550, %v65
    %v552 = vpop.permute.xlu0 %551
    %554 = vset.pattern.permute.xlu0 3
    %555 = vperm.xlu0 %554, %v66
    %v556 = vpop.permute.xlu0 %555
    %558 = vset.pattern.permute.xlu0 3
    %559 = vperm.xlu0 %558, %v67
    %v560 = vpop.permute.xlu0 %559
    %562 = vset.pattern.permute.xlu0 3
    %563 = vperm.xlu0 %562, %v68
    %v564 = vpop.permute.xlu0 %563
    %566 = vset.pattern.permute.xlu0 3
    %567 = vperm.xlu0 %566, %v69
    %v568 = vpop.permute.xlu0 %567
    %570 = vset.pattern.permute.xlu0 3
    %571 = vperm.xlu0 %570, %v70
    %v572 = vpop.permute.xlu0 %571
    %574 = vset.pattern.permute.xlu0 3
    %575 = vperm.xlu0 %574, %v71
    %v576 = vpop.permute.xlu0 %575
    %578 = vset.pattern.permute.xlu0 3
    %579 = vperm.xlu0 %578, %v72
    %v580 = vpop.permute.xlu0 %579
    %582 = vset.pattern.permute.xlu0 3
    %583 = vperm.xlu0 %582, %v73
    %v584 = vpop.permute.xlu0 %583
    %586 = vset.pattern.permute.xlu0 3
    %587 = vperm.xlu0 %586, %v74
    %v588 = vpop.permute.xlu0 %587
    %590 = vset.pattern.permute.xlu0 3
    %591 = vperm.xlu0 %590, %v75
    %v592 = vpop.permute.xlu0 %591
    %594 = vset.pattern.permute.xlu0 3
    %595 = vperm.xlu0 %594, %v76
    %v596 = vpop.permute.xlu0 %595
    %598 = vset.pattern.permute.xlu0 3
    %599 = vperm.xlu0 %598, %v77
    %v600 = vpop.permute.xlu0 %599
    %v602 = vsel %vm530, %v540, 0.0
    %v603 = vsel %vm530, %v544, 0.0
    %v604 = vsel %vm531, %v548, 0.0
    %v605 = vsel %vm531, %v552, 0.0
    %v606 = vsel %vm532, %v556, 0.0
    %v607 = vsel %vm532, %v560, 0.0
    %v608 = vsel %vm533, %v564, 0.0
    %v609 = vsel %vm533, %v568, 0.0
    %v610 = vsel %vm534, %v572, 0.0
    %v611 = vsel %vm534, %v576, 0.0
    %v612 = vsel %vm535, %v580, 0.0
    %v613 = vsel %vm535, %v584, 0.0
    %v614 = vsel %vm536, %v588, 0.0
    %v615 = vsel %vm536, %v592, 0.0
    %v616 = vsel %vm537, %v596, 0.0
    %v617 = vsel %vm537, %v600, 0.0
    %v618 = vadd.f32 %v483, %v602
    %v619 = vadd.f32 %v484, %v603
    %v620 = vadd.f32 %v485, %v604
    %v621 = vadd.f32 %v486, %v605
    %v622 = vadd.f32 %v487, %v606
    %v623 = vadd.f32 %v488, %v607
    %v624 = vadd.f32 %v489, %v608
    %v625 = vadd.f32 %v490, %v609
    %v626 = vadd.f32 %v491, %v610
    %v627 = vadd.f32 %v492, %v611
    %v628 = vadd.f32 %v493, %v612
    %v629 = vadd.f32 %v494, %v613
    %v630 = vadd.f32 %v495, %v614
    %v631 = vadd.f32 %v496, %v615
    %v632 = vadd.f32 %v497, %v616
    %v633 = vadd.f32 %v498, %v617
    %vm634 = vcmp.eq.s32.totalorder %v61, 4
    %v635 = vsel %vm634, 1, 0
    %v636 = vrot.slane %v635, 1
    %v637 = vrot.slane %v635, 2
    %v638 = vrot.slane %v635, 3
    %v639 = vrot.slane %v635, 4
    %v640 = vrot.slane %v635, 5
    %v641 = vrot.slane %v635, 6
    %v642 = vrot.slane %v635, 7
    %vm643 = vcmp.ne.s32.totalorder %v636, 0
    %vm644 = vcmp.ne.s32.totalorder %v637, 0
    %vm645 = vcmp.ne.s32.totalorder %v638, 0
    %vm646 = vcmp.ne.s32.totalorder %v639, 0
    %vm647 = vcmp.ne.s32.totalorder %v640, 0
    %vm648 = vcmp.ne.s32.totalorder %v641, 0
    %vm649 = vcmp.ne.s32.totalorder %v642, 0
    %v650 = vsel %vm643, 1, 0
    %v651 = vsel %vm644, 1, 0
    %v652 = vsel %vm645, 1, 0
    %v653 = vsel %vm646, 1, 0
    %v654 = vsel %vm647, 1, 0
    %v655 = vsel %vm648, 1, 0
    %v656 = vsel %vm649, 1, 0
    %v657 = vperm.slane %v635, 0
    %v658 = vperm.slane %v650, 0
    %v659 = vperm.slane %v651, 0
    %v660 = vperm.slane %v652, 0
    %v661 = vperm.slane %v653, 0
    %v662 = vperm.slane %v654, 0
    %v663 = vperm.slane %v655, 0
    %v664 = vperm.slane %v656, 0
    %vm665 = vcmp.eq.s32.totalorder %v657, 1
    %vm666 = vcmp.eq.s32.totalorder %v658, 1
    %vm667 = vcmp.eq.s32.totalorder %v659, 1
    %vm668 = vcmp.eq.s32.totalorder %v660, 1
    %vm669 = vcmp.eq.s32.totalorder %v661, 1
    %vm670 = vcmp.eq.s32.totalorder %v662, 1
    %vm671 = vcmp.eq.s32.totalorder %v663, 1
    %vm672 = vcmp.eq.s32.totalorder %v664, 1
    %673 = vset.pattern.permute.xlu0 4
    %674 = vperm.xlu0 %673, %v62
    %v675 = vpop.permute.xlu0 %674
    %677 = vset.pattern.permute.xlu0 4
    %678 = vperm.xlu0 %677, %v63
    %v679 = vpop.permute.xlu0 %678
    %681 = vset.pattern.permute.xlu0 4
    %682 = vperm.xlu0 %681, %v64
    %v683 = vpop.permute.xlu0 %682
    %685 = vset.pattern.permute.xlu0 4
    %686 = vperm.xlu0 %685, %v65
    %v687 = vpop.permute.xlu0 %686
    %689 = vset.pattern.permute.xlu0 4
    %690 = vperm.xlu0 %689, %v66
    %v691 = vpop.permute.xlu0 %690
    %693 = vset.pattern.permute.xlu0 4
    %694 = vperm.xlu0 %693, %v67
    %v695 = vpop.permute.xlu0 %694
    %697 = vset.pattern.permute.xlu0 4
    %698 = vperm.xlu0 %697, %v68
    %v699 = vpop.permute.xlu0 %698
    %701 = vset.pattern.permute.xlu0 4
    %702 = vperm.xlu0 %701, %v69
    %v703 = vpop.permute.xlu0 %702
    %705 = vset.pattern.permute.xlu0 4
    %706 = vperm.xlu0 %705, %v70
    %v707 = vpop.permute.xlu0 %706
    %709 = vset.pattern.permute.xlu0 4
    %710 = vperm.xlu0 %709, %v71
    %v711 = vpop.permute.xlu0 %710
    %713 = vset.pattern.permute.xlu0 4
    %714 = vperm.xlu0 %713, %v72
    %v715 = vpop.permute.xlu0 %714
    %717 = vset.pattern.permute.xlu0 4
    %718 = vperm.xlu0 %717, %v73
    %v719 = vpop.permute.xlu0 %718
    %721 = vset.pattern.permute.xlu0 4
    %722 = vperm.xlu0 %721, %v74
    %v723 = vpop.permute.xlu0 %722
    %725 = vset.pattern.permute.xlu0 4
    %726 = vperm.xlu0 %725, %v75
    %v727 = vpop.permute.xlu0 %726
    %729 = vset.pattern.permute.xlu0 4
    %730 = vperm.xlu0 %729, %v76
    %v731 = vpop.permute.xlu0 %730
    %733 = vset.pattern.permute.xlu0 4
    %734 = vperm.xlu0 %733, %v77
    %v735 = vpop.permute.xlu0 %734
    %v737 = vsel %vm665, %v675, 0.0
    %v738 = vsel %vm665, %v679, 0.0
    %v739 = vsel %vm666, %v683, 0.0
    %v740 = vsel %vm666, %v687, 0.0
    %v741 = vsel %vm667, %v691, 0.0
    %v742 = vsel %vm667, %v695, 0.0
    %v743 = vsel %vm668, %v699, 0.0
    %v744 = vsel %vm668, %v703, 0.0
    %v745 = vsel %vm669, %v707, 0.0
    %v746 = vsel %vm669, %v711, 0.0
    %v747 = vsel %vm670, %v715, 0.0
    %v748 = vsel %vm670, %v719, 0.0
    %v749 = vsel %vm671, %v723, 0.0
    %v750 = vsel %vm671, %v727, 0.0
    %v751 = vsel %vm672, %v731, 0.0
    %v752 = vsel %vm672, %v735, 0.0
    %v753 = vadd.f32 %v618, %v737
    %v754 = vadd.f32 %v619, %v738
    %v755 = vadd.f32 %v620, %v739
    %v756 = vadd.f32 %v621, %v740
    %v757 = vadd.f32 %v622, %v741
    %v758 = vadd.f32 %v623, %v742
    %v759 = vadd.f32 %v624, %v743
    %v760 = vadd.f32 %v625, %v744
    %v761 = vadd.f32 %v626, %v745
    %v762 = vadd.f32 %v627, %v746
    %v763 = vadd.f32 %v628, %v747
    %v764 = vadd.f32 %v629, %v748
    %v765 = vadd.f32 %v630, %v749
    %v766 = vadd.f32 %v631, %v750
    %v767 = vadd.f32 %v632, %v751
    %v768 = vadd.f32 %v633, %v752
    %vm769 = vcmp.eq.s32.totalorder %v61, 5
    %v770 = vsel %vm769, 1, 0
    %v771 = vrot.slane %v770, 1
    %v772 = vrot.slane %v770, 2
    %v773 = vrot.slane %v770, 3
    %v774 = vrot.slane %v770, 4
    %v775 = vrot.slane %v770, 5
    %v776 = vrot.slane %v770, 6
    %v777 = vrot.slane %v770, 7
    %vm778 = vcmp.ne.s32.totalorder %v771, 0
    %vm779 = vcmp.ne.s32.totalorder %v772, 0
    %vm780 = vcmp.ne.s32.totalorder %v773, 0
    %vm781 = vcmp.ne.s32.totalorder %v774, 0
    %vm782 = vcmp.ne.s32.totalorder %v775, 0
    %vm783 = vcmp.ne.s32.totalorder %v776, 0
    %vm784 = vcmp.ne.s32.totalorder %v777, 0
    %v785 = vsel %vm778, 1, 0
    %v786 = vsel %vm779, 1, 0
    %v787 = vsel %vm780, 1, 0
    %v788 = vsel %vm781, 1, 0
    %v789 = vsel %vm782, 1, 0
    %v790 = vsel %vm783, 1, 0
    %v791 = vsel %vm784, 1, 0
    %v792 = vperm.slane %v770, 0
    %v793 = vperm.slane %v785, 0
    %v794 = vperm.slane %v786, 0
    %v795 = vperm.slane %v787, 0
    %v796 = vperm.slane %v788, 0
    %v797 = vperm.slane %v789, 0
    %v798 = vperm.slane %v790, 0
    %v799 = vperm.slane %v791, 0
    %vm800 = vcmp.eq.s32.totalorder %v792, 1
    %vm801 = vcmp.eq.s32.totalorder %v793, 1
    %vm802 = vcmp.eq.s32.totalorder %v794, 1
    %vm803 = vcmp.eq.s32.totalorder %v795, 1
    %vm804 = vcmp.eq.s32.totalorder %v796, 1
    %vm805 = vcmp.eq.s32.totalorder %v797, 1
    %vm806 = vcmp.eq.s32.totalorder %v798, 1
    %vm807 = vcmp.eq.s32.totalorder %v799, 1
    %808 = vset.pattern.permute.xlu0 5
    %809 = vperm.xlu0 %808, %v62
    %v810 = vpop.permute.xlu0 %809
    %812 = vset.pattern.permute.xlu0 5
    %813 = vperm.xlu0 %812, %v63
    %v814 = vpop.permute.xlu0 %813
    %816 = vset.pattern.permute.xlu0 5
    %817 = vperm.xlu0 %816, %v64
    %v818 = vpop.permute.xlu0 %817
    %820 = vset.pattern.permute.xlu0 5
    %821 = vperm.xlu0 %820, %v65
    %v822 = vpop.permute.xlu0 %821
    %824 = vset.pattern.permute.xlu0 5
    %825 = vperm.xlu0 %824, %v66
    %v826 = vpop.permute.xlu0 %825
    %828 = vset.pattern.permute.xlu0 5
    %829 = vperm.xlu0 %828, %v67
    %v830 = vpop.permute.xlu0 %829
    %832 = vset.pattern.permute.xlu0 5
    %833 = vperm.xlu0 %832, %v68
    %v834 = vpop.permute.xlu0 %833
    %836 = vset.pattern.permute.xlu0 5
    %837 = vperm.xlu0 %836, %v69
    %v838 = vpop.permute.xlu0 %837
    %840 = vset.pattern.permute.xlu0 5
    %841 = vperm.xlu0 %840, %v70
    %v842 = vpop.permute.xlu0 %841
    %844 = vset.pattern.permute.xlu0 5
    %845 = vperm.xlu0 %844, %v71
    %v846 = vpop.permute.xlu0 %845
    %848 = vset.pattern.permute.xlu0 5
    %849 = vperm.xlu0 %848, %v72
    %v850 = vpop.permute.xlu0 %849
    %852 = vset.pattern.permute.xlu0 5
    %853 = vperm.xlu0 %852, %v73
    %v854 = vpop.permute.xlu0 %853
    %856 = vset.pattern.permute.xlu0 5
    %857 = vperm.xlu0 %856, %v74
    %v858 = vpop.permute.xlu0 %857
    %860 = vset.pattern.permute.xlu0 5
    %861 = vperm.xlu0 %860, %v75
    %v862 = vpop.permute.xlu0 %861
    %864 = vset.pattern.permute.xlu0 5
    %865 = vperm.xlu0 %864, %v76
    %v866 = vpop.permute.xlu0 %865
    %868 = vset.pattern.permute.xlu0 5
    %869 = vperm.xlu0 %868, %v77
    %v870 = vpop.permute.xlu0 %869
    %v872 = vsel %vm800, %v810, 0.0
    %v873 = vsel %vm800, %v814, 0.0
    %v874 = vsel %vm801, %v818, 0.0
    %v875 = vsel %vm801, %v822, 0.0
    %v876 = vsel %vm802, %v826, 0.0
    %v877 = vsel %vm802, %v830, 0.0
    %v878 = vsel %vm803, %v834, 0.0
    %v879 = vsel %vm803, %v838, 0.0
    %v880 = vsel %vm804, %v842, 0.0
    %v881 = vsel %vm804, %v846, 0.0
    %v882 = vsel %vm805, %v850, 0.0
    %v883 = vsel %vm805, %v854, 0.0
    %v884 = vsel %vm806, %v858, 0.0
    %v885 = vsel %vm806, %v862, 0.0
    %v886 = vsel %vm807, %v866, 0.0
    %v887 = vsel %vm807, %v870, 0.0
    %v888 = vadd.f32 %v753, %v872
    %v889 = vadd.f32 %v754, %v873
    %v890 = vadd.f32 %v755, %v874
    %v891 = vadd.f32 %v756, %v875
    %v892 = vadd.f32 %v757, %v876
    %v893 = vadd.f32 %v758, %v877
    %v894 = vadd.f32 %v759, %v878
    %v895 = vadd.f32 %v760, %v879
    %v896 = vadd.f32 %v761, %v880
    %v897 = vadd.f32 %v762, %v881
    %v898 = vadd.f32 %v763, %v882
    %v899 = vadd.f32 %v764, %v883
    %v900 = vadd.f32 %v765, %v884
    %v901 = vadd.f32 %v766, %v885
    %v902 = vadd.f32 %v767, %v886
    %v903 = vadd.f32 %v768, %v887
    %v904 = vrot.slane %v892, 4
    %vm905 = vcmask 1047556
    %v906 = vsel %vm905, %v904, %v888
    %v907 = vrot.slane %v888, 4
    %v908 = vsel %vm905, %v892, %v907
    %v910 = vunpack.c.l.s4 1983009808
    %v911 = vunpack.c.0.s8 %v910
    %v912 = vperm.slane %v906, %v911
    %v914 = vunpack.c.l.s4 1983009808
    %v915 = vunpack.c.0.s8 %v914
    %v916 = vperm.slane %v908, %v915
    %v917 = vrot.slane %v894, 4
    %v918 = vsel %vm905, %v917, %v890
    %v919 = vrot.slane %v890, 4
    %v920 = vsel %vm905, %v894, %v919
    %v922 = vunpack.c.l.s4 1983009808
    %v923 = vunpack.c.0.s8 %v922
    %v924 = vperm.slane %v918, %v923
    %v926 = vunpack.c.l.s4 1983009808
    %v927 = vunpack.c.0.s8 %v926
    %v928 = vperm.slane %v920, %v927
    %v929 = vrot.slane %v900, 4
    %v930 = vsel %vm905, %v929, %v896
    %v931 = vrot.slane %v896, 4
    %v932 = vsel %vm905, %v900, %v931
    %v934 = vunpack.c.l.s4 1983009808
    %v935 = vunpack.c.0.s8 %v934
    %v936 = vperm.slane %v930, %v935
    %v938 = vunpack.c.l.s4 1983009808
    %v939 = vunpack.c.0.s8 %v938
    %v940 = vperm.slane %v932, %v939
    %v941 = vrot.slane %v902, 4
    %v942 = vsel %vm905, %v941, %v898
    %v943 = vrot.slane %v898, 4
    %v944 = vsel %vm905, %v902, %v943
    %v946 = vunpack.c.l.s4 1983009808
    %v947 = vunpack.c.0.s8 %v946
    %v948 = vperm.slane %v942, %v947
    %v950 = vunpack.c.l.s4 1983009808
    %v951 = vunpack.c.0.s8 %v950
    %v952 = vperm.slane %v944, %v951
    %v953 = vrot.slane %v924, 4
    %v954 = vsel %vm905, %v953, %v912
    %v955 = vrot.slane %v912, 4
    %v956 = vsel %vm905, %v924, %v955
    %v958 = vunpack.c.l.s4 1934713408
    %v959 = vunpack.c.0.s8 %v958
    %v960 = vperm.slane %v954, %v959
    %v962 = vunpack.c.l.s4 1934713408
    %v963 = vunpack.c.0.s8 %v962
    %v964 = vperm.slane %v956, %v963
    %v965 = vrot.slane %v928, 4
    %v966 = vsel %vm905, %v965, %v916
    %v967 = vrot.slane %v916, 4
    %v968 = vsel %vm905, %v928, %v967
    %v970 = vunpack.c.l.s4 1934713408
    %v971 = vunpack.c.0.s8 %v970
    %v972 = vperm.slane %v966, %v971
    %v974 = vunpack.c.l.s4 1934713408
    %v975 = vunpack.c.0.s8 %v974
    %v976 = vperm.slane %v968, %v975
    %v977 = vrot.slane %v948, 4
    %v978 = vsel %vm905, %v977, %v936
    %v979 = vrot.slane %v936, 4
    %v980 = vsel %vm905, %v948, %v979
    %v982 = vunpack.c.l.s4 1934713408
    %v983 = vunpack.c.0.s8 %v982
    %v984 = vperm.slane %v978, %v983
    %v986 = vunpack.c.l.s4 1934713408
    %v987 = vunpack.c.0.s8 %v986
    %v988 = vperm.slane %v980, %v987
    %v989 = vrot.slane %v952, 4
    %v990 = vsel %vm905, %v989, %v940
    %v991 = vrot.slane %v940, 4
    %v992 = vsel %vm905, %v952, %v991
    %v994 = vunpack.c.l.s4 1934713408
    %v995 = vunpack.c.0.s8 %v994
    %v996 = vperm.slane %v990, %v995
    %v998 = vunpack.c.l.s4 1934713408
    %v999 = vunpack.c.0.s8 %v998
    %v1000 = vperm.slane %v992, %v999
    %v1001 = vrot.slane %v984, 4
    %v1002 = vsel %vm905, %v1001, %v960
    %v1003 = vrot.slane %v960, 4
    %v1004 = vsel %vm905, %v984, %v1003
    %v1005 = vrot.slane %v988, 4
    %v1006 = vsel %vm905, %v1005, %v964
    %v1007 = vrot.slane %v964, 4
    %v1008 = vsel %vm905, %v988, %v1007
    %v1009 = vrot.slane %v996, 4
    %v1010 = vsel %vm905, %v1009, %v972
    %v1011 = vrot.slane %v972, 4
    %v1012 = vsel %vm905, %v996, %v1011
    %v1013 = vrot.slane %v1000, 4
    %v1014 = vsel %vm905, %v1013, %v976
    %v1015 = vrot.slane %v976, 4
    %v1016 = vsel %vm905, %v1000, %v1015
    %v1017 = vrot.slane %v893, 4
    %v1018 = vsel %vm905, %v1017, %v889
    %v1019 = vrot.slane %v889, 4
    %v1020 = vsel %vm905, %v893, %v1019
    %v1022 = vunpack.c.l.s4 1983009808
    %v1023 = vunpack.c.0.s8 %v1022
    %v1024 = vperm.slane %v1018, %v1023
    %v1026 = vunpack.c.l.s4 1983009808
    %v1027 = vunpack.c.0.s8 %v1026
    %v1028 = vperm.slane %v1020, %v1027
    %v1029 = vrot.slane %v895, 4
    %v1030 = vsel %vm905, %v1029, %v891
    %v1031 = vrot.slane %v891, 4
    %v1032 = vsel %vm905, %v895, %v1031
    %v1034 = vunpack.c.l.s4 1983009808
    %v1035 = vunpack.c.0.s8 %v1034
    %v1036 = vperm.slane %v1030, %v1035
    %v1038 = vunpack.c.l.s4 1983009808
    %v1039 = vunpack.c.0.s8 %v1038
    %v1040 = vperm.slane %v1032, %v1039
    %v1041 = vrot.slane %v901, 4
    %v1042 = vsel %vm905, %v1041, %v897
    %v1043 = vrot.slane %v897, 4
    %v1044 = vsel %vm905, %v901, %v1043
    %v1046 = vunpack.c.l.s4 1983009808
    %v1047 = vunpack.c.0.s8 %v1046
    %v1048 = vperm.slane %v1042, %v1047
    %v1050 = vunpack.c.l.s4 1983009808
    %v1051 = vunpack.c.0.s8 %v1050
    %v1052 = vperm.slane %v1044, %v1051
    %v1053 = vrot.slane %v903, 4
    %v1054 = vsel %vm905, %v1053, %v899
    %v1055 = vrot.slane %v899, 4
    %v1056 = vsel %vm905, %v903, %v1055
    %v1058 = vunpack.c.l.s4 1983009808
    %v1059 = vunpack.c.0.s8 %v1058
    %v1060 = vperm.slane %v1054, %v1059
    %v1062 = vunpack.c.l.s4 1983009808
    %v1063 = vunpack.c.0.s8 %v1062
    %v1064 = vperm.slane %v1056, %v1063
    %v1065 = vrot.slane %v1036, 4
    %v1066 = vsel %vm905, %v1065, %v1024
    %v1067 = vrot.slane %v1024, 4
    %v1068 = vsel %vm905, %v1036, %v1067
    %v1070 = vunpack.c.l.s4 1934713408
    %v1071 = vunpack.c.0.s8 %v1070
    %v1072 = vperm.slane %v1066, %v1071
    %v1074 = vunpack.c.l.s4 1934713408
    %v1075 = vunpack.c.0.s8 %v1074
    %v1076 = vperm.slane %v1068, %v1075
    %v1077 = vrot.slane %v1040, 4
    %v1078 = vsel %vm905, %v1077, %v1028
    %v1079 = vrot.slane %v1028, 4
    %v1080 = vsel %vm905, %v1040, %v1079
    %v1082 = vunpack.c.l.s4 1934713408
    %v1083 = vunpack.c.0.s8 %v1082
    %v1084 = vperm.slane %v1078, %v1083
    %v1086 = vunpack.c.l.s4 1934713408
    %v1087 = vunpack.c.0.s8 %v1086
    %v1088 = vperm.slane %v1080, %v1087
    %v1089 = vrot.slane %v1060, 4
    %v1090 = vsel %vm905, %v1089, %v1048
    %v1091 = vrot.slane %v1048, 4
    %v1092 = vsel %vm905, %v1060, %v1091
    %v1094 = vunpack.c.l.s4 1934713408
    %v1095 = vunpack.c.0.s8 %v1094
    %v1096 = vperm.slane %v1090, %v1095
    %v1098 = vunpack.c.l.s4 1934713408
    %v1099 = vunpack.c.0.s8 %v1098
    %v1100 = vperm.slane %v1092, %v1099
    %v1101 = vrot.slane %v1064, 4
    %v1102 = vsel %vm905, %v1101, %v1052
    %v1103 = vrot.slane %v1052, 4
    %v1104 = vsel %vm905, %v1064, %v1103
    %v1106 = vunpack.c.l.s4 1934713408
    %v1107 = vunpack.c.0.s8 %v1106
    %v1108 = vperm.slane %v1102, %v1107
    %v1110 = vunpack.c.l.s4 1934713408
    %v1111 = vunpack.c.0.s8 %v1110
    %v1112 = vperm.slane %v1104, %v1111
    %v1113 = vrot.slane %v1096, 4
    %v1114 = vsel %vm905, %v1113, %v1072
    %v1115 = vrot.slane %v1072, 4
    %v1116 = vsel %vm905, %v1096, %v1115
    %v1117 = vrot.slane %v1100, 4
    %v1118 = vsel %vm905, %v1117, %v1076
    %v1119 = vrot.slane %v1076, 4
    %v1120 = vsel %vm905, %v1100, %v1119
    %v1121 = vrot.slane %v1108, 4
    %v1122 = vsel %vm905, %v1121, %v1084
    %v1123 = vrot.slane %v1084, 4
    %v1124 = vsel %vm905, %v1108, %v1123
    %v1125 = vrot.slane %v1112, 4
    %v1126 = vsel %vm905, %v1125, %v1088
    %v1127 = vrot.slane %v1088, 4
    %v1128 = vsel %vm905, %v1112, %v1127
    %1129 = vst [vmem:[#allocation2] sm:$0xff] %v1002
    %1130 = vst [vmem:[#allocation2 + $0x8] sm:$0xff] %v1004
    %1131 = vst [vmem:[#allocation2 + $0x10] sm:$0xff] %v1006
    %1132 = vst [vmem:[#allocation2 + $0x18] sm:$0xff] %v1008
    %1133 = vst [vmem:[#allocation2 + $0x20] sm:$0xff] %v1010
    %1134 = vst [vmem:[#allocation2 + $0x28] sm:$0xff] %v1012
    %1135 = vst [vmem:[#allocation2 + $0x30] sm:$0xff] %v1014
    %1136 = vst [vmem:[#allocation2 + $0x38] sm:$0xff] %v1016
    %1137 = vst [vmem:[#allocation2 + $0x40] sm:$0xff] %v1114
    %1138 = vst [vmem:[#allocation2 + $0x48] sm:$0xff] %v1116
    %1139 = vst [vmem:[#allocation2 + $0x50] sm:$0xff] %v1118
    %1140 = vst [vmem:[#allocation2 + $0x58] sm:$0xff] %v1120
    %1141 = vst [vmem:[#allocation2 + $0x60] sm:$0xff] %v1122
    %1142 = vst [vmem:[#allocation2 + $0x68] sm:$0xff] %v1124
    %1143 = vst [vmem:[#allocation2 + $0x70] sm:$0xff] %v1126
    %1144 = vst [vmem:[#allocation2 + $0x78] sm:$0xff] %v1128
    %v1145 = vlaneseq
    %v1146 = vand.u32 %v1145, 127
    %1147 = vrot.lane.b32.xlu0 %v61, 2
    %v1148 = vpop.permute.xlu0 %1147
    %vm1149 = vcmask 15360
    %v1150 = vsel %vm1149, 4, %v1148
    %vm1151 = vcmp.ne.s32.totalorder %v61, 4
    %vm1152 = vcmp.ne.s32.totalorder %v61, %v1150
    %vm1153 = vmand %vm1151, %vm1152
    %vm1154 = vcmp.ge.s32.totalorder %v1146, 2
    %vm1155 = vmand %vm1153, %vm1154
    %v1156 = vsel %vm1155, 0.0, -1e+30
    %v1157 = vld [vmem:[%s4] sm:$0xff]
    // Predicated region
    $region22: #{tpu_custom_call.1} parent=20 // pred_check
      %p1158 = pneg %p55
    $region23: #{tpu_custom_call.1} parent=20 // pred_check_branch
      %1160 = sbr.rel (%p1158) target = $region25
    $region24: #{tpu_custom_call.1} parent=20 // pred_region
      %vm1161 = vcmp.le.s32.totalorder %v1146, 1
      %v1162 = vld [vmem:[#allocation2] sm:$0xff]
      %v1163 = vsel %vm1161, %v1162, -1e+30
      %1164 = vst [vmem:[#allocation3] sm:$0xff] %v1163
    $region25: #{tpu_custom_call.1} parent=20 // pred_fallthru
      _
    %s1165 = scalar_select %p55, 1, 0
    %s1166 = ssub.s32 %s53, %s54
    %p1167 = scmp.gt.s32.totalorder %s1166, 0
    %s1168 = scalar_select %p1167, %s1166, 0
    %p1169 = scmp.lt.s32.totalorder %s1168, 16
    %s1170 = scalar_select %p1169, %s1168, 16
    %v1171 = vld [vmem:[#allocation3] sm:$0xff]
    // While loop
    $region26: #{tpu_custom_call.1} parent=20 // loop_pre_header
      _
    $region27: #{tpu_custom_call.1} parent=20 // loop_header
      %s1173 = sphi %s1165, %s1175
      %p1174 = scmp.ge.s32.totalorder %s1173, %s1170
      %v1178 = vphi %v1171, %v1218
    $region28: #{tpu_custom_call.1} parent=20 // loop_header_branch
      %1177 = sbr.rel (%p1174) target = $region32
    $region29: #{tpu_custom_call.1} parent=20 // loop_body
      %s1179 = smul.u32 %s1173, 8
      %s1180 = scalar_lea.vmem [#allocation2], %s1179
      %v1181 = vld [vmem:[%s1180] sm:$0xff]
      %1183 = vrot.lane.b32.xlu0 %v1178, 1
      %v1184 = vpop.permute.xlu0 %1183
      %vm1186 = vcmask 7168
      %v1187 = vsel %vm1186, -1e+30, %v1184
      %1188 = vrot.lane.b32.xlu0 %v1178, 2
      %v1189 = vpop.permute.xlu0 %1188
      %v1191 = vsel %vm1149, -1e+30, %v1189
      %v1192 = vadd.f32 %v1191, %v1156
      %v1193 = vmax.f32 %v1178, %v1187
      %v1194 = vmax.f32 %v1193, %v1192
      %v1195 = vsub.f32 %v1178, %v1194
      %v1196 = vmul.f32 %v1195, 1.442695
      %v1197 = vpow.pop %v1196
      %v1198 = vsub.f32 %v1187, %v1194
      %v1199 = vmul.f32 %v1198, 1.442695
      %v1200 = vpow.pop %v1199
      %v1201 = vadd.f32 %v1197, %v1200
      %v1202 = vsub.f32 %v1192, %v1194
      %v1203 = vmul.f32 %v1202, 1.442695
      %v1204 = vpow.pop %v1203
      %v1205 = vadd.f32 %v1201, %v1204
      %v1206 = vlog2.pop %v1205
      %v1207 = vmul.f32 %v1206, 0.6931472
      %v1208 = vadd.f32 %v1194, %v1207
      %v1209 = vadd.f32 %v1208, %v1181
      %s1210 = sadd.s32 %s54, %s1173
      %v1211 = vstv %s1210
      %vm1212 = vcmp.lt.s32.totalorder %v1211, %v1157
      %v1213 = vsel %vm1212, 1, 0
      %1214 = vset.pattern.permute.xlu0 0
      %1215 = vperm.xlu0 %1214, %v1213
      %v1216 = vpop.permute.xlu0 %1215
      %vm1217 = vcmp.eq.s32.totalorder %v1216, 1
      %v1218 = vsel %vm1217, %v1209, %v1178
    $region30: #{tpu_custom_call.1} parent=20 // loop_footer
      %s1175 = sadd.s32 %s1173, 1
    $region31: #{tpu_custom_call.1} parent=20 // loop_footer_branch
      %1172 = sbr.rel target = $region27
    $region32: #{tpu_custom_call.1} parent=20 // loop_exit
      _
    %1219 = vst [vmem:[#allocation3] sm:$0xff] %v1178
  $region21: #{tpu_custom_call.1} parent=0 // pred_fallthru
    _
  // Predicated region
  $region33: #{tpu_custom_call.1} parent=0 // pred_check
    %p1220 = pneg %p55
  $region34: #{tpu_custom_call.1} parent=0 // pred_check_branch
    %1222 = sbr.rel (%p1220) target = $region36
  $region35: #{tpu_custom_call.1} parent=0 // pred_region
    %v1223 = vlaneseq
    %v1224 = vand.u32 %v1223, 127
    %v1225 = vld [vmem:[#allocation3] sm:$0xff]
    %v1226 = vld [vmem:[%s5] sm:$0xff]
    %v1227 = vmul.u32 %v1226, 2
    %1228 = vset.pattern.permute.xlu0 0
    %1229 = vperm.xlu0 %1228, %v1227
    %v1230 = vpop.permute.xlu0 %1229
    %vm1231 = vcmp.eq.s32.totalorder %v1224, %v1230
    %v1232 = vsub.s32 %v1227, 1
    %1233 = vset.pattern.permute.xlu0 0
    %1234 = vperm.xlu0 %1233, %v1232
    %v1235 = vpop.permute.xlu0 %1234
    %vm1236 = vcmp.eq.s32.totalorder %v1224, %v1235
    %vm1237 = vmor %vm1231, %vm1236
    %v1238 = vsel %vm1237, %v1225, -1e+30
    %1239 = vmax.xlane.f32.xlu0 %v1238
    %v1240 = vpop.xlane.xlu0 %1239
    %v1241 = vsub.f32 %v1238, %v1240
    %v1242 = vmul.f32 %v1241, 1.442695
    %v1243 = vpow.pop %v1242
    %1244 = vadd.xlane.f32.xlu0 %v1243
    %v1245 = vpop.xlane.xlu0 %1244
    %v1246 = vlog2.pop %v1245
    %v1247 = vmul.f32 %v1246, 0.6931472
    %v1248 = vadd.f32 %v1240, %v1247
    %v1249 = vsub.f32 0.0, %v1248
    %vm1250 = vcmp.gt.f32.partialorder %v1249, 1e+29
    %v1251 = vsel %vm1250, 0.0, %v1249
    %vm1252 = vcmask 7168
    %1253 = vst.msk [vmem:[%s6] sm:$0xff] %vm1252, %v1251
  $region36: #{tpu_custom_call.1} parent=0 // pred_fallthru
    _
  // Predicated region
  $region37: #{tpu_custom_call.1} parent=0 // pred_check
    _
  $region38: #{tpu_custom_call.1} parent=0 // pred_check_branch
    %1255 = sbr.rel (0) target = $region40
  $region39: #{tpu_custom_call.1} parent=0 // pred_region
    _
  $region40: #{tpu_custom_call.1} parent=0 // pred_fallthru
    _
  // Predicated region
  $region41: #{tpu_custom_call.1} parent=0 // pred_check
    _
  $region42: #{tpu_custom_call.1} parent=0 // pred_check_branch
    %1257 = sbr.rel (0) target = $region44
  $region43: #{tpu_custom_call.1} parent=0 // pred_region
    _
  $region44: #{tpu_custom_call.1} parent=0 // pred_fallthru
    _

</llo_original>
